<compile_context>
chip_gen: v5e
topology: v5e:2x2
jax: 0.10.0
libtpu: 0.0.40
codegen_flags: <defaults>
</compile_context>

<pallas_src>
import functools

import numpy as np
import jax
import jax.numpy as jnp
from jax import lax
from jax.experimental import pallas as pl
from jax.experimental.pallas import tpu as pltpu


def _out_size(n, stride):
    # PyTorch Conv2d output size for kernel k with padding k // 2 (k in {1, 3}).
    return (n - 1) // stride + 1


def _round_bf16(x):
    return x.astype(jnp.bfloat16).astype(jnp.float32)


# ----------------------------------------------------------------------------
# Fused ResidualBlock Pallas kernel (one batch image per grid step)
# ----------------------------------------------------------------------------
def _residual_block_kernel(x_ref, a1_ref, b1_ref, a2_ref, p_ref, bo_ref,
                           o_ref, xe_ref, ye_ref, *, H, Ho, stride):
    """Fused ResidualBlock for one image.

    x_ref : (H, W*Cin)            bf16  block input (row-dense)
    a1_ref: (3, W*Cin, W*Cout)    bf16  conv1 banded weights per row-tap
    b1_ref: (1, W*Cout)           f32   conv1 bias (BN folded), tiled over W
    a2_ref: (3, W*Cout, Wo*Cout)  bf16  conv2 banded weights (column stride and
                                        reflect column padding folded in)
    p_ref : (W*Cin, Wo*Cout)      bf16  1x1 projection (or identity) band
    bo_ref: (1, Wo*Cout)          f32   conv2 bias (BN folded) + projection bias
    o_ref : (Ho, Wo*Cout)               block output
    xe_ref: (H+2, W*Cin)          f32   scratch: row-reflect-extended input
    ye_ref: (H+2, W*Cout)         f32   scratch: row-reflect-extended conv1 out
    """
    x = x_ref[...]

    # Row reflect-extension of the input (reflect pad = 1 along H).
    xe_ref[1:H + 1, :] = x.astype(jnp.float32)
    xe_ref[0:1, :] = x[1:2, :].astype(jnp.float32)
    xe_ref[H + 1:H + 2, :] = x[H - 2:H - 1, :].astype(jnp.float32)

    # conv1 (3x3, stride 1) + BN + ReLU.  Column taps and reflect column
    # padding are folded into the banded a1 matrices -> only 3 row taps left.
    n1 = b1_ref.shape[-1]
    acc1 = jnp.zeros((H, n1), jnp.float32)
    for ki in range(3):
        lhs = xe_ref[ki:ki + H, :].astype(jnp.bfloat16)
        acc1 = acc1 + jnp.dot(lhs, a1_ref[ki],
                              preferred_element_type=jnp.float32)
    y1 = jnp.maximum(acc1 + b1_ref[...], 0.0)

    # Row reflect-extension of the intermediate activation (kept in VMEM).
    ye_ref[1:H + 1, :] = y1
    ye_ref[0:1, :] = y1[1:2, :]
    ye_ref[H + 1:H + 2, :] = y1[H - 2:H - 1, :]

    # conv2 (3x3, stride s) + BN.  Row stride via strided sublane reads of the
    # scratch; column stride is already folded into a2.
    n2 = bo_ref.shape[-1]
    acc2 = jnp.zeros((Ho, n2), jnp.float32)
    for ki in range(3):
        if stride == 1:
            lhs = ye_ref[ki:ki + Ho, :]
        else:
            lhs = ye_ref[pl.ds(ki, Ho, stride=stride), :]
        acc2 = acc2 + jnp.dot(lhs.astype(jnp.bfloat16), a2_ref[ki],
                              preferred_element_type=jnp.float32)

    # Skip path: 1x1 projection (or identity) band on strided input rows.
    if stride == 1:
        lhs_skip = xe_ref[1:1 + Ho, :]
    else:
        lhs_skip = xe_ref[pl.ds(1, Ho, stride=stride), :]
    acc2 = acc2 + jnp.dot(lhs_skip.astype(jnp.bfloat16), p_ref[...],
                          preferred_element_type=jnp.float32)

    out = jnp.maximum(acc2 + bo_ref[...], 0.0)
    o_ref[...] = out.astype(o_ref.dtype)


# ----------------------------------------------------------------------------
# Host-side construction of banded (row-dense) conv weights
# ----------------------------------------------------------------------------
def _col_select(k, pad, stride, w_in, w_out):
    """0/1 matrix sel[kj, b, j] = 1 iff unpadded source column b feeds output
    column j through column-tap kj (reflect padding and stride folded in)."""
    sel = np.zeros((k, w_in, w_out), np.float32)
    for kj in range(k):
        for j in range(w_out):
            b = stride * j + kj - pad
            if b < 0:
                b = -b
            if b > w_in - 1:
                b = 2 * (w_in - 1) - b
            sel[kj, b, j] = 1.0
    return jnp.asarray(sel)


def _conv_bands(w_eff, w_in, w_out, stride, pad):
    """(kh, kw, cin, cout) conv weights -> (kh, w_in*cin, w_out*cout) banded
    matrices acting on row-dense activations (x row layout: j*cin + c)."""
    kh, kw, cin, cout = w_eff.shape
    sel = _col_select(kw, pad, stride, w_in, w_out)
    band = jnp.einsum("kbj,ikcd->ibcjd", sel, _round_bf16(w_eff))
    return band.reshape(kh, w_in * cin, w_out * cout).astype(jnp.bfloat16)


# ----------------------------------------------------------------------------
# pallas_call wrapper for one ResidualBlock
# ----------------------------------------------------------------------------
def _apply_residual_block(x_rows, spec, out_dtype):
    H, W = spec["H"], spec["W"]
    cin, cout = spec["cin"], spec["cout"]
    stride, Ho, Wo = spec["stride"], spec["Ho"], spec["Wo"]
    B = x_rows.shape[0]
    K1, N1, N2 = W * cin, W * cout, Wo * cout
    assert x_rows.shape == (B, H, K1)

    kernel = functools.partial(_residual_block_kernel,
                               H=H, Ho=Ho, stride=stride)

    flops = 2 * B * (3 * H * K1 * N1 + 3 * Ho * N1 * N2 + Ho * K1 * N2)
    bytes_accessed = (B * H * K1 * 2 + 3 * K1 * N1 * 2 + 3 * N1 * N2 * 2
                      + K1 * N2 * 2 + (N1 + N2) * 4
                      + B * Ho * N2 * jnp.dtype(out_dtype).itemsize)

    return pl.pallas_call(
        kernel,
        out_shape=jax.ShapeDtypeStruct((B, Ho, N2), out_dtype),
        grid=(B,),
        in_specs=[
            pl.BlockSpec((None, H, K1), lambda b: (b, 0, 0)),
            pl.BlockSpec((3, K1, N1), lambda b: (0, 0, 0)),
            pl.BlockSpec((1, N1), lambda b: (0, 0)),
            pl.BlockSpec((3, N1, N2), lambda b: (0, 0, 0)),
            pl.BlockSpec((K1, N2), lambda b: (0, 0)),
            pl.BlockSpec((1, N2), lambda b: (0, 0)),
        ],
        out_specs=pl.BlockSpec((None, Ho, N2), lambda b: (b, 0, 0)),
        scratch_shapes=[
            pltpu.VMEM((H + 2, K1), jnp.float32),
            pltpu.VMEM((H + 2, N1), jnp.float32),
        ],
        compiler_params=pltpu.CompilerParams(
            dimension_semantics=("parallel",)),
        cost_estimate=pl.CostEstimate(
            flops=int(flops), transcendentals=0,
            bytes_accessed=int(bytes_accessed)),
    )(x_rows.astype(jnp.bfloat16), spec["a1"], spec["b1"], spec["a2"],
      spec["p"], spec["bo"])


# ----------------------------------------------------------------------------
# Parameters (deterministic, in-script) and per-block "compiled" specs
# ----------------------------------------------------------------------------
def _make_conv_params(key, k, cin, cout):
    k1, k2 = jax.random.split(key)
    w = 0.1 * jax.random.normal(k1, (k, k, cin, cout), jnp.float32)
    b = 0.1 * jax.random.normal(k2, (cout,), jnp.float32)
    return w, b


def _make_bn_affine(key, c, eps=1e-5):
    k1, k2, k3, k4 = jax.random.split(key, 4)
    gamma = 1.0 + 0.1 * jax.random.normal(k1, (c,), jnp.float32)
    beta = 0.1 * jax.random.normal(k2, (c,), jnp.float32)
    mean = 0.1 * jax.random.normal(k3, (c,), jnp.float32)
    var = 1.0 + 0.1 * jnp.abs(jax.random.normal(k4, (c,), jnp.float32))
    scale = gamma / jnp.sqrt(var + eps)
    shift = beta - mean * scale
    return scale, shift


def make_residual_block_params(key, cin, cout, downsample):
    keys = jax.random.split(key, 5)
    p = {"downsample": downsample}
    p["w1"], p["b1"] = _make_conv_params(keys[0], 3, cin, cout)
    p["s1"], p["t1"] = _make_bn_affine(keys[1], cout)
    p["w2"], p["b2"] = _make_conv_params(keys[2], 3, cout, cout)
    p["s2"], p["t2"] = _make_bn_affine(keys[3], cout)
    if cin != cout:
        p["wp"], p["bp"] = _make_conv_params(keys[4], 1, cin, cout)
    else:
        p["wp"], p["bp"] = None, None
    return p


def make_downsampling_block_params(key, channels_in, channels_out, n_blocks):
    # Mirrors DownSamplingBlock.__init__: PyTorch list-multiplication shares
    # ONE ResidualBlock instance, so there are exactly two parameter sets.
    k_down, k_plain = jax.random.split(key)
    p_down = make_residual_block_params(k_down, channels_in, channels_out, True)
    p_plain = make_residual_block_params(k_plain, channels_out, channels_out,
                                         False)
    return [p_down] * (n_blocks - 1) + [p_plain] * (n_blocks - 1)


def build_block_spec(p, H, W):
    cin = p["w1"].shape[2]
    cout = p["w1"].shape[3]
    stride = 2 if p["downsample"] else 1
    Ho, Wo = _out_size(H, stride), _out_size(W, stride)

    # Fold eval-mode BatchNorm into conv weights / biases.
    w1 = p["w1"].astype(jnp.float32) * p["s1"][None, None, None, :]
    b1 = p["b1"] * p["s1"] + p["t1"]
    w2 = p["w2"].astype(jnp.float32) * p["s2"][None, None, None, :]
    b2 = p["b2"] * p["s2"] + p["t2"]

    if p["wp"] is not None:
        wp = p["wp"].astype(jnp.float32)
        bp = p["bp"].astype(jnp.float32)
    else:
        # Identity skip (cin == cout, as in the PyTorch module; with
        # downsample=True and no projection PyTorch itself would shape-error).
        assert cin == cout
        wp = jnp.eye(cin, dtype=jnp.float32)[None, None, :, :]
        bp = jnp.zeros((cout,), jnp.float32)

    return {
        "H": H, "W": W, "Ho": Ho, "Wo": Wo,
        "cin": cin, "cout": cout, "stride": stride,
        "a1": _conv_bands(w1, W, W, 1, 1),
        "b1": jnp.tile(b1.astype(jnp.float32), W).reshape(1, W * cout),
        "a2": _conv_bands(w2, W, Wo, stride, 1),
        "p": _conv_bands(wp, W, Wo, stride, 0)[0],
        "bo": jnp.tile((b2 + bp).astype(jnp.float32), Wo).reshape(1, Wo * cout),
    }


def build_downsampling_block_specs(params_list, H, W):
    specs = []
    for p in params_list:
        spec = build_block_spec(p, H, W)
        specs.append(spec)
        H, W = spec["Ho"], spec["Wo"]
    return specs


# ----------------------------------------------------------------------------
# Forward pass (NCHW at the module boundary, kernel-native layout inside)
# ----------------------------------------------------------------------------
def downsampling_block_forward(x_nchw, specs):
    B, C, H, W = x_nchw.shape
    x = jnp.transpose(x_nchw, (0, 2, 3, 1)).reshape(B, H, W * C)
    x = x.astype(jnp.bfloat16)
    for i, spec in enumerate(specs):
        last = i == len(specs) - 1
        x = _apply_residual_block(
            x, spec, jnp.float32 if last else jnp.bfloat16)
    Ho, Wo, cout = specs[-1]["Ho"], specs[-1]["Wo"], specs[-1]["cout"]
    return jnp.transpose(x.reshape(B, Ho, Wo, cout), (0, 3, 1, 2))


# ----------------------------------------------------------------------------
# Pure-JAX reference (independent lax.conv path, same bf16 rounding points)
# ----------------------------------------------------------------------------
def _ref_conv(x, w, b, stride, pad, bn_scale=None, bn_shift=None):
    w_eff = w.astype(jnp.float32)
    b_eff = b.astype(jnp.float32)
    if bn_scale is not None:
        w_eff = w_eff * bn_scale[None, None, None, :]
        b_eff = b_eff * bn_scale + bn_shift
    w_eff = _round_bf16(w_eff)
    if pad:
        x = jnp.pad(x, ((0, 0), (pad, pad), (pad, pad), (0, 0)),
                    mode="reflect")
    y = lax.conv_general_dilated(
        x, w_eff, window_strides=(stride, stride), padding="VALID",
        dimension_numbers=("NHWC", "HWIO", "NHWC"),
        precision=lax.Precision.HIGHEST)
    return y + b_eff


def _ref_block(x, p):
    s = 2 if p["downsample"] else 1
    y1 = jnp.maximum(
        _ref_conv(x, p["w1"], p["b1"], 1, 1, p["s1"], p["t1"]), 0.0)
    y1 = _round_bf16(y1)
    y2 = _ref_conv(y1, p["w2"], p["b2"], s, 1, p["s2"], p["t2"])
    if p["wp"] is not None:
        skip = _ref_conv(x, p["wp"], p["bp"], s, 0)
    else:
        skip = x[:, ::s, ::s, :]
    return jnp.maximum(y2 + skip, 0.0)


def _ref_forward(x_nchw, params_list):
    x = _round_bf16(jnp.transpose(x_nchw, (0, 2, 3, 1)))
    for i, p in enumerate(params_list):
        x = _ref_block(x, p)
        if i != len(params_list) - 1:
            x = _round_bf16(x)
    return jnp.transpose(x, (0, 3, 1, 2))


# ----------------------------------------------------------------------------
if __name__ == "__main__":
    key = jax.random.PRNGKey(0)
    k_x, k_p = jax.random.split(key)

    B, C_IN, C_OUT, H, W = 2, 4, 8, 16, 16
    N_BLOCKS = 2

    x = jax.random.normal(k_x, (B, C_IN, H, W), jnp.float32)   # NCHW, PyTorch-like
    params = make_downsampling_block_params(k_p, C_IN, C_OUT, N_BLOCKS)
    specs = build_downsampling_block_specs(params, H, W)

    fwd = jax.jit(lambda inp: downsampling_block_forward(inp, specs))
    out = jax.block_until_ready(fwd(x))
    assert out.shape == (B, C_OUT, H // 2, W // 2), out.shape
    assert out.dtype == jnp.float32

    ref = jax.block_until_ready(_ref_forward(x, params))
    max_err = float(jnp.max(jnp.abs(out - ref)))
    assert jnp.allclose(out, ref, atol=2e-2, rtol=2e-2), (
        f"mismatch vs reference (max abs err {max_err})")

    print("KERNEL_OK")
</pallas_src>

<mosaic_0001>
module attributes {stable_mosaic.version = 11 : i64} {
  func.func @_residual_block_kernel(%arg0: i32, %arg1: memref<1x16x64xbf16, #tpu.memory_space<vmem>>, %arg2: memref<3x64x128xbf16, #tpu.memory_space<vmem>>, %arg3: memref<1x128xf32, #tpu.memory_space<vmem>>, %arg4: memref<3x128x64xbf16, #tpu.memory_space<vmem>>, %arg5: memref<64x64xbf16, #tpu.memory_space<vmem>>, %arg6: memref<1x64xf32, #tpu.memory_space<vmem>>, %arg7: memref<1x8x64xbf16, #tpu.memory_space<vmem>>, %arg8: memref<18x64xf32, #tpu.memory_space<vmem>>, %arg9: memref<18x128xf32, #tpu.memory_space<vmem>>) attributes {dimension_semantics = [#tpu.dimension_semantics<parallel>], iteration_bounds = array<i64: 2>, scalar_prefetch = 0 : i64, scratch_operands = 2 : i64, tpu.core_type = #tpu.core_type<tc>, window_params = [{transform_indices = @transform_0, window_bounds = array<i64: 1, 16, 64>}, {pipeline_mode = #tpu.pipeline_mode<synchronous>, transform_indices = @transform_1, window_bounds = array<i64: 3, 64, 128>}, {pipeline_mode = #tpu.pipeline_mode<synchronous>, transform_indices = @transform_2, window_bounds = array<i64: 1, 128>}, {pipeline_mode = #tpu.pipeline_mode<synchronous>, transform_indices = @transform_3, window_bounds = array<i64: 3, 128, 64>}, {pipeline_mode = #tpu.pipeline_mode<synchronous>, transform_indices = @transform_4, window_bounds = array<i64: 64, 64>}, {pipeline_mode = #tpu.pipeline_mode<synchronous>, transform_indices = @transform_5, window_bounds = array<i64: 1, 64>}, {transform_indices = @transform_6, window_bounds = array<i64: 1, 8, 64>}]} {
    %c0 = arith.constant 0 : index
    %c0_0 = arith.constant 0 : index
    %c0_1 = arith.constant 0 : index
    %0 = vector.load %arg1[%c0, %c0_0, %c0_1] : memref<1x16x64xbf16, #tpu.memory_space<vmem>>, vector<1x16x64xbf16>
    %1 = vector.shape_cast %0 : vector<1x16x64xbf16> to vector<16x64xbf16>
    %2 = arith.extf %1 : vector<16x64xbf16> to vector<16x64xf32>
    %c1 = arith.constant 1 : index
    %c0_2 = arith.constant 0 : index
    %3 = vector.load %arg8[%c1, %c0_2] : memref<18x64xf32, #tpu.memory_space<vmem>>, vector<16x64xf32>
    tpu.vector_store %arg8[%c1, %c0_2], %2 {strides = array<i32>} : memref<18x64xf32, #tpu.memory_space<vmem>>, vector<16x64xf32>,
    %4 = vector.extract_strided_slice %1 {offsets = [1, 0], sizes = [1, 64], strides = [1, 1]} : vector<16x64xbf16> to vector<1x64xbf16>
    %5 = arith.extf %4 : vector<1x64xbf16> to vector<1x64xf32>
    %c0_3 = arith.constant 0 : index
    %c0_4 = arith.constant 0 : index
    %6 = vector.load %arg8[%c0_3, %c0_4] : memref<18x64xf32, #tpu.memory_space<vmem>>, vector<1x64xf32>
    tpu.vector_store %arg8[%c0_3, %c0_4], %5 {strides = array<i32>} : memref<18x64xf32, #tpu.memory_space<vmem>>, vector<1x64xf32>,
    %7 = vector.extract_strided_slice %1 {offsets = [14, 0], sizes = [1, 64], strides = [1, 1]} : vector<16x64xbf16> to vector<1x64xbf16>
    %8 = arith.extf %7 : vector<1x64xbf16> to vector<1x64xf32>
    %c17 = arith.constant 17 : index
    %c0_5 = arith.constant 0 : index
    %9 = vector.load %arg8[%c17, %c0_5] : memref<18x64xf32, #tpu.memory_space<vmem>>, vector<1x64xf32>
    tpu.vector_store %arg8[%c17, %c0_5], %8 {strides = array<i32>} : memref<18x64xf32, #tpu.memory_space<vmem>>, vector<1x64xf32>,
    %cst = arith.constant 0.000000e+00 : f32
    %10 = vector.broadcast %cst : f32 to vector<16x128xf32>
    %c0_6 = arith.constant 0 : index
    %c0_7 = arith.constant 0 : index
    %11 = vector.load %arg8[%c0_6, %c0_7] : memref<18x64xf32, #tpu.memory_space<vmem>>, vector<16x64xf32>
    %12 = arith.truncf %11 : vector<16x64xf32> to vector<16x64xbf16>
    %c0_8 = arith.constant 0 : index
    %c0_9 = arith.constant 0 : index
    %c0_10 = arith.constant 0 : index
    %13 = vector.load %arg2[%c0_8, %c0_9, %c0_10] : memref<3x64x128xbf16, #tpu.memory_space<vmem>>, vector<1x64x128xbf16>
    %14 = vector.shape_cast %13 : vector<1x64x128xbf16> to vector<64x128xbf16>
    %cst_11 = arith.constant dense<0.000000e+00> : vector<16x128xf32>
    %15 = tpu.matmul %12, %14, %cst_11 {dimension_numbers = #tpu.dot_dimension_numbers<[1], [0], [0], [1], [0, 0, 1, 1], [], []>} : vector<16x64xbf16>, vector<64x128xbf16>, vector<16x128xf32> -> vector<16x128xf32>
    %16 = arith.addf %10, %15 : vector<16x128xf32>
    %c1_12 = arith.constant 1 : index
    %c0_13 = arith.constant 0 : index
    %17 = vector.load %arg8[%c1_12, %c0_13] : memref<18x64xf32, #tpu.memory_space<vmem>>, vector<16x64xf32>
    %18 = arith.truncf %17 : vector<16x64xf32> to vector<16x64xbf16>
    %c1_14 = arith.constant 1 : index
    %c0_15 = arith.constant 0 : index
    %c0_16 = arith.constant 0 : index
    %19 = vector.load %arg2[%c1_14, %c0_15, %c0_16] : memref<3x64x128xbf16, #tpu.memory_space<vmem>>, vector<1x64x128xbf16>
    %20 = vector.shape_cast %19 : vector<1x64x128xbf16> to vector<64x128xbf16>
    %cst_17 = arith.constant dense<0.000000e+00> : vector<16x128xf32>
    %21 = tpu.matmul %18, %20, %cst_17 {dimension_numbers = #tpu.dot_dimension_numbers<[1], [0], [0], [1], [0, 0, 1, 1], [], []>} : vector<16x64xbf16>, vector<64x128xbf16>, vector<16x128xf32> -> vector<16x128xf32>
    %22 = arith.addf %16, %21 : vector<16x128xf32>
    %c2 = arith.constant 2 : index
    %c0_18 = arith.constant 0 : index
    %23 = vector.load %arg8[%c2, %c0_18] : memref<18x64xf32, #tpu.memory_space<vmem>>, vector<16x64xf32>
    %24 = arith.truncf %23 : vector<16x64xf32> to vector<16x64xbf16>
    %c2_19 = arith.constant 2 : index
    %c0_20 = arith.constant 0 : index
    %c0_21 = arith.constant 0 : index
    %25 = vector.load %arg2[%c2_19, %c0_20, %c0_21] : memref<3x64x128xbf16, #tpu.memory_space<vmem>>, vector<1x64x128xbf16>
    %26 = vector.shape_cast %25 : vector<1x64x128xbf16> to vector<64x128xbf16>
    %cst_22 = arith.constant dense<0.000000e+00> : vector<16x128xf32>
    %27 = tpu.matmul %24, %26, %cst_22 {dimension_numbers = #tpu.dot_dimension_numbers<[1], [0], [0], [1], [0, 0, 1, 1], [], []>} : vector<16x64xbf16>, vector<64x128xbf16>, vector<16x128xf32> -> vector<16x128xf32>
    %28 = arith.addf %22, %27 : vector<16x128xf32>
    %c0_23 = arith.constant 0 : index
    %c0_24 = arith.constant 0 : index
    %29 = vector.load %arg3[%c0_23, %c0_24] : memref<1x128xf32, #tpu.memory_space<vmem>>, vector<1x128xf32>
    %30 = vector.broadcast %29 : vector<1x128xf32> to vector<16x128xf32>
    %31 = arith.addf %28, %30 : vector<16x128xf32>
    %cst_25 = arith.constant 0.000000e+00 : f32
    %32 = vector.broadcast %cst_25 : f32 to vector<16x128xf32>
    %33 = arith.maximumf %31, %32 : vector<16x128xf32>
    %c1_26 = arith.constant 1 : index
    %c0_27 = arith.constant 0 : index
    %34 = vector.load %arg9[%c1_26, %c0_27] : memref<18x128xf32, #tpu.memory_space<vmem>>, vector<16x128xf32>
    tpu.vector_store %arg9[%c1_26, %c0_27], %33 {strides = array<i32>} : memref<18x128xf32, #tpu.memory_space<vmem>>, vector<16x128xf32>,
    %35 = vector.extract_strided_slice %33 {offsets = [1, 0], sizes = [1, 128], strides = [1, 1]} : vector<16x128xf32> to vector<1x128xf32>
    %c0_28 = arith.constant 0 : index
    %c0_29 = arith.constant 0 : index
    %36 = vector.load %arg9[%c0_28, %c0_29] : memref<18x128xf32, #tpu.memory_space<vmem>>, vector<1x128xf32>
    tpu.vector_store %arg9[%c0_28, %c0_29], %35 {strides = array<i32>} : memref<18x128xf32, #tpu.memory_space<vmem>>, vector<1x128xf32>,
    %37 = vector.extract_strided_slice %33 {offsets = [14, 0], sizes = [1, 128], strides = [1, 1]} : vector<16x128xf32> to vector<1x128xf32>
    %c17_30 = arith.constant 17 : index
    %c0_31 = arith.constant 0 : index
    %38 = vector.load %arg9[%c17_30, %c0_31] : memref<18x128xf32, #tpu.memory_space<vmem>>, vector<1x128xf32>
    tpu.vector_store %arg9[%c17_30, %c0_31], %37 {strides = array<i32>} : memref<18x128xf32, #tpu.memory_space<vmem>>, vector<1x128xf32>,
    %cst_32 = arith.constant 0.000000e+00 : f32
    %39 = vector.broadcast %cst_32 : f32 to vector<8x64xf32>
    %c0_33 = arith.constant 0 : index
    %c0_34 = arith.constant 0 : index
    %40 = tpu.strided_load %arg9[%c0_33, %c0_34] {strides = array<i32: 2, 1>} : memref<18x128xf32, #tpu.memory_space<vmem>>, vector<8x128xf32>
    %41 = arith.truncf %40 : vector<8x128xf32> to vector<8x128xbf16>
    %c0_35 = arith.constant 0 : index
    %c0_36 = arith.constant 0 : index
    %c0_37 = arith.constant 0 : index
    %42 = vector.load %arg4[%c0_35, %c0_36, %c0_37] : memref<3x128x64xbf16, #tpu.memory_space<vmem>>, vector<1x128x64xbf16>
    %43 = vector.shape_cast %42 : vector<1x128x64xbf16> to vector<128x64xbf16>
    %cst_38 = arith.constant dense<0.000000e+00> : vector<8x64xf32>
    %44 = tpu.matmul %41, %43, %cst_38 {dimension_numbers = #tpu.dot_dimension_numbers<[1], [0], [0], [1], [0, 0, 1, 1], [], []>} : vector<8x128xbf16>, vector<128x64xbf16>, vector<8x64xf32> -> vector<8x64xf32>
    %45 = arith.addf %39, %44 : vector<8x64xf32>
    %c1_39 = arith.constant 1 : index
    %c0_40 = arith.constant 0 : index
    %46 = tpu.strided_load %arg9[%c1_39, %c0_40] {strides = array<i32: 2, 1>} : memref<18x128xf32, #tpu.memory_space<vmem>>, vector<8x128xf32>
    %47 = arith.truncf %46 : vector<8x128xf32> to vector<8x128xbf16>
    %c1_41 = arith.constant 1 : index
    %c0_42 = arith.constant 0 : index
    %c0_43 = arith.constant 0 : index
    %48 = vector.load %arg4[%c1_41, %c0_42, %c0_43] : memref<3x128x64xbf16, #tpu.memory_space<vmem>>, vector<1x128x64xbf16>
    %49 = vector.shape_cast %48 : vector<1x128x64xbf16> to vector<128x64xbf16>
    %cst_44 = arith.constant dense<0.000000e+00> : vector<8x64xf32>
    %50 = tpu.matmul %47, %49, %cst_44 {dimension_numbers = #tpu.dot_dimension_numbers<[1], [0], [0], [1], [0, 0, 1, 1], [], []>} : vector<8x128xbf16>, vector<128x64xbf16>, vector<8x64xf32> -> vector<8x64xf32>
    %51 = arith.addf %45, %50 : vector<8x64xf32>
    %c2_45 = arith.constant 2 : index
    %c0_46 = arith.constant 0 : index
    %52 = tpu.strided_load %arg9[%c2_45, %c0_46] {strides = array<i32: 2, 1>} : memref<18x128xf32, #tpu.memory_space<vmem>>, vector<8x128xf32>
    %53 = arith.truncf %52 : vector<8x128xf32> to vector<8x128xbf16>
    %c2_47 = arith.constant 2 : index
    %c0_48 = arith.constant 0 : index
    %c0_49 = arith.constant 0 : index
    %54 = vector.load %arg4[%c2_47, %c0_48, %c0_49] : memref<3x128x64xbf16, #tpu.memory_space<vmem>>, vector<1x128x64xbf16>
    %55 = vector.shape_cast %54 : vector<1x128x64xbf16> to vector<128x64xbf16>
    %cst_50 = arith.constant dense<0.000000e+00> : vector<8x64xf32>
    %56 = tpu.matmul %53, %55, %cst_50 {dimension_numbers = #tpu.dot_dimension_numbers<[1], [0], [0], [1], [0, 0, 1, 1], [], []>} : vector<8x128xbf16>, vector<128x64xbf16>, vector<8x64xf32> -> vector<8x64xf32>
    %57 = arith.addf %51, %56 : vector<8x64xf32>
    %c1_51 = arith.constant 1 : index
    %c0_52 = arith.constant 0 : index
    %58 = tpu.strided_load %arg8[%c1_51, %c0_52] {strides = array<i32: 2, 1>} : memref<18x64xf32, #tpu.memory_space<vmem>>, vector<8x64xf32>
    %59 = arith.truncf %58 : vector<8x64xf32> to vector<8x64xbf16>
    %c0_53 = arith.constant 0 : index
    %c0_54 = arith.constant 0 : index
    %60 = vector.load %arg5[%c0_53, %c0_54] : memref<64x64xbf16, #tpu.memory_space<vmem>>, vector<64x64xbf16>
    %cst_55 = arith.constant dense<0.000000e+00> : vector<8x64xf32>
    %61 = tpu.matmul %59, %60, %cst_55 {dimension_numbers = #tpu.dot_dimension_numbers<[1], [0], [0], [1], [0, 0, 1, 1], [], []>} : vector<8x64xbf16>, vector<64x64xbf16>, vector<8x64xf32> -> vector<8x64xf32>
    %62 = arith.addf %57, %61 : vector<8x64xf32>
    %c0_56 = arith.constant 0 : index
    %c0_57 = arith.constant 0 : index
    %63 = vector.load %arg6[%c0_56, %c0_57] : memref<1x64xf32, #tpu.memory_space<vmem>>, vector<1x64xf32>
    %64 = vector.broadcast %63 : vector<1x64xf32> to vector<8x64xf32>
    %65 = arith.addf %62, %64 : vector<8x64xf32>
    %cst_58 = arith.constant 0.000000e+00 : f32
    %66 = vector.broadcast %cst_58 : f32 to vector<8x64xf32>
    %67 = arith.maximumf %65, %66 : vector<8x64xf32>
    %68 = arith.truncf %67 : vector<8x64xf32> to vector<8x64xbf16>
    %c0_59 = arith.constant 0 : index
    %c0_60 = arith.constant 0 : index
    %c0_61 = arith.constant 0 : index
    %69 = vector.load %arg7[%c0_59, %c0_60, %c0_61] : memref<1x8x64xbf16, #tpu.memory_space<vmem>>, vector<1x8x64xbf16>
    %70 = vector.shape_cast %69 : vector<1x8x64xbf16> to vector<8x64xbf16>
    %71 = vector.shape_cast %68 : vector<8x64xbf16> to vector<1x8x64xbf16>
    tpu.vector_store %arg7[%c0_59, %c0_60, %c0_61], %71 {strides = array<i32>} : memref<1x8x64xbf16, #tpu.memory_space<vmem>>, vector<1x8x64xbf16>,
    return
  }
  func.func @transform_0(%arg0: i32) -> (i32, i32, i32) {
    %c0_i32 = arith.constant 0 : i32
    %c0_i32_0 = arith.constant 0 : i32
    %c0_i32_1 = arith.constant 0 : i32
    return %arg0, %c0_i32, %c0_i32_0 : i32, i32, i32
  }
  func.func @transform_1(%arg0: i32) -> (i32, i32, i32) {
    %c0_i32 = arith.constant 0 : i32
    %c0_i32_0 = arith.constant 0 : i32
    %c0_i32_1 = arith.constant 0 : i32
    %c0_i32_2 = arith.constant 0 : i32
    return %c0_i32, %c0_i32_0, %c0_i32_1 : i32, i32, i32
  }
  func.func @transform_2(%arg0: i32) -> (i32, i32) {
    %c0_i32 = arith.constant 0 : i32
    %c0_i32_0 = arith.constant 0 : i32
    %c0_i32_1 = arith.constant 0 : i32
    return %c0_i32, %c0_i32_0 : i32, i32
  }
  func.func @transform_3(%arg0: i32) -> (i32, i32, i32) {
    %c0_i32 = arith.constant 0 : i32
    %c0_i32_0 = arith.constant 0 : i32
    %c0_i32_1 = arith.constant 0 : i32
    %c0_i32_2 = arith.constant 0 : i32
    return %c0_i32, %c0_i32_0, %c0_i32_1 : i32, i32, i32
  }
  func.func @transform_4(%arg0: i32) -> (i32, i32) {
    %c0_i32 = arith.constant 0 : i32
    %c0_i32_0 = arith.constant 0 : i32
    %c0_i32_1 = arith.constant 0 : i32
    return %c0_i32, %c0_i32_0 : i32, i32
  }
  func.func @transform_5(%arg0: i32) -> (i32, i32) {
    %c0_i32 = arith.constant 0 : i32
    %c0_i32_0 = arith.constant 0 : i32
    %c0_i32_1 = arith.constant 0 : i32
    return %c0_i32, %c0_i32_0 : i32, i32
  }
  func.func @transform_6(%arg0: i32) -> (i32, i32, i32) {
    %c0_i32 = arith.constant 0 : i32
    %c0_i32_0 = arith.constant 0 : i32
    %c0_i32_1 = arith.constant 0 : i32
    return %arg0, %c0_i32, %c0_i32_0 : i32, i32, i32
  }
}

module attributes {stable_mosaic.version = 11 : i64} {
  func.func @_residual_block_kernel(%arg0: i32, %arg1: memref<1x8x64xbf16, #tpu.memory_space<vmem>>, %arg2: memref<3x64x64xbf16, #tpu.memory_space<vmem>>, %arg3: memref<1x64xf32, #tpu.memory_space<vmem>>, %arg4: memref<3x64x64xbf16, #tpu.memory_space<vmem>>, %arg5: memref<64x64xbf16, #tpu.memory_space<vmem>>, %arg6: memref<1x64xf32, #tpu.memory_space<vmem>>, %arg7: memref<1x8x64xf32, #tpu.memory_space<vmem>>, %arg8: memref<10x64xf32, #tpu.memory_space<vmem>>, %arg9: memref<10x64xf32, #tpu.memory_space<vmem>>) attributes {dimension_semantics = [#tpu.dimension_semantics<parallel>], iteration_bounds = array<i64: 2>, scalar_prefetch = 0 : i64, scratch_operands = 2 : i64, tpu.core_type = #tpu.core_type<tc>, window_params = [{transform_indices = @transform_0, window_bounds = array<i64: 1, 8, 64>}, {pipeline_mode = #tpu.pipeline_mode<synchronous>, transform_indices = @transform_1, window_bounds = array<i64: 3, 64, 64>}, {pipeline_mode = #tpu.pipeline_mode<synchronous>, transform_indices = @transform_2, window_bounds = array<i64: 1, 64>}, {pipeline_mode = #tpu.pipeline_mode<synchronous>, transform_indices = @transform_3, window_bounds = array<i64: 3, 64, 64>}, {pipeline_mode = #tpu.pipeline_mode<synchronous>, transform_indices = @transform_4, window_bounds = array<i64: 64, 64>}, {pipeline_mode = #tpu.pipeline_mode<synchronous>, transform_indices = @transform_5, window_bounds = array<i64: 1, 64>}, {transform_indices = @transform_6, window_bounds = array<i64: 1, 8, 64>}]} {
    %c0 = arith.constant 0 : index
    %c0_0 = arith.constant 0 : index
    %c0_1 = arith.constant 0 : index
    %0 = vector.load %arg1[%c0, %c0_0, %c0_1] : memref<1x8x64xbf16, #tpu.memory_space<vmem>>, vector<1x8x64xbf16>
    %1 = vector.shape_cast %0 : vector<1x8x64xbf16> to vector<8x64xbf16>
    %2 = arith.extf %1 : vector<8x64xbf16> to vector<8x64xf32>
    %c1 = arith.constant 1 : index
    %c0_2 = arith.constant 0 : index
    %3 = vector.load %arg8[%c1, %c0_2] : memref<10x64xf32, #tpu.memory_space<vmem>>, vector<8x64xf32>
    tpu.vector_store %arg8[%c1, %c0_2], %2 {strides = array<i32>} : memref<10x64xf32, #tpu.memory_space<vmem>>, vector<8x64xf32>,
    %4 = vector.extract_strided_slice %1 {offsets = [1, 0], sizes = [1, 64], strides = [1, 1]} : vector<8x64xbf16> to vector<1x64xbf16>
    %5 = arith.extf %4 : vector<1x64xbf16> to vector<1x64xf32>
    %c0_3 = arith.constant 0 : index
    %c0_4 = arith.constant 0 : index
    %6 = vector.load %arg8[%c0_3, %c0_4] : memref<10x64xf32, #tpu.memory_space<vmem>>, vector<1x64xf32>
    tpu.vector_store %arg8[%c0_3, %c0_4], %5 {strides = array<i32>} : memref<10x64xf32, #tpu.memory_space<vmem>>, vector<1x64xf32>,
    %7 = vector.extract_strided_slice %1 {offsets = [6, 0], sizes = [1, 64], strides = [1, 1]} : vector<8x64xbf16> to vector<1x64xbf16>
    %8 = arith.extf %7 : vector<1x64xbf16> to vector<1x64xf32>
    %c9 = arith.constant 9 : index
    %c0_5 = arith.constant 0 : index
    %9 = vector.load %arg8[%c9, %c0_5] : memref<10x64xf32, #tpu.memory_space<vmem>>, vector<1x64xf32>
    tpu.vector_store %arg8[%c9, %c0_5], %8 {strides = array<i32>} : memref<10x64xf32, #tpu.memory_space<vmem>>, vector<1x64xf32>,
    %cst = arith.constant 0.000000e+00 : f32
    %10 = vector.broadcast %cst : f32 to vector<8x64xf32>
    %c0_6 = arith.constant 0 : index
    %c0_7 = arith.constant 0 : index
    %11 = vector.load %arg8[%c0_6, %c0_7] : memref<10x64xf32, #tpu.memory_space<vmem>>, vector<8x64xf32>
    %12 = arith.truncf %11 : vector<8x64xf32> to vector<8x64xbf16>
    %c0_8 = arith.constant 0 : index
    %c0_9 = arith.constant 0 : index
    %c0_10 = arith.constant 0 : index
    %13 = vector.load %arg2[%c0_8, %c0_9, %c0_10] : memref<3x64x64xbf16, #tpu.memory_space<vmem>>, vector<1x64x64xbf16>
    %14 = vector.shape_cast %13 : vector<1x64x64xbf16> to vector<64x64xbf16>
    %cst_11 = arith.constant dense<0.000000e+00> : vector<8x64xf32>
    %15 = tpu.matmul %12, %14, %cst_11 {dimension_numbers = #tpu.dot_dimension_numbers<[1], [0], [0], [1], [0, 0, 1, 1], [], []>} : vector<8x64xbf16>, vector<64x64xbf16>, vector<8x64xf32> -> vector<8x64xf32>
    %16 = arith.addf %10, %15 : vector<8x64xf32>
    %c1_12 = arith.constant 1 : index
    %c0_13 = arith.constant 0 : index
    %17 = vector.load %arg8[%c1_12, %c0_13] : memref<10x64xf32, #tpu.memory_space<vmem>>, vector<8x64xf32>
    %18 = arith.truncf %17 : vector<8x64xf32> to vector<8x64xbf16>
    %c1_14 = arith.constant 1 : index
    %c0_15 = arith.constant 0 : index
    %c0_16 = arith.constant 0 : index
    %19 = vector.load %arg2[%c1_14, %c0_15, %c0_16] : memref<3x64x64xbf16, #tpu.memory_space<vmem>>, vector<1x64x64xbf16>
    %20 = vector.shape_cast %19 : vector<1x64x64xbf16> to vector<64x64xbf16>
    %cst_17 = arith.constant dense<0.000000e+00> : vector<8x64xf32>
    %21 = tpu.matmul %18, %20, %cst_17 {dimension_numbers = #tpu.dot_dimension_numbers<[1], [0], [0], [1], [0, 0, 1, 1], [], []>} : vector<8x64xbf16>, vector<64x64xbf16>, vector<8x64xf32> -> vector<8x64xf32>
    %22 = arith.addf %16, %21 : vector<8x64xf32>
    %c2 = arith.constant 2 : index
    %c0_18 = arith.constant 0 : index
    %23 = vector.load %arg8[%c2, %c0_18] : memref<10x64xf32, #tpu.memory_space<vmem>>, vector<8x64xf32>
    %24 = arith.truncf %23 : vector<8x64xf32> to vector<8x64xbf16>
    %c2_19 = arith.constant 2 : index
    %c0_20 = arith.constant 0 : index
    %c0_21 = arith.constant 0 : index
    %25 = vector.load %arg2[%c2_19, %c0_20, %c0_21] : memref<3x64x64xbf16, #tpu.memory_space<vmem>>, vector<1x64x64xbf16>
    %26 = vector.shape_cast %25 : vector<1x64x64xbf16> to vector<64x64xbf16>
    %cst_22 = arith.constant dense<0.000000e+00> : vector<8x64xf32>
    %27 = tpu.matmul %24, %26, %cst_22 {dimension_numbers = #tpu.dot_dimension_numbers<[1], [0], [0], [1], [0, 0, 1, 1], [], []>} : vector<8x64xbf16>, vector<64x64xbf16>, vector<8x64xf32> -> vector<8x64xf32>
    %28 = arith.addf %22, %27 : vector<8x64xf32>
    %c0_23 = arith.constant 0 : index
    %c0_24 = arith.constant 0 : index
    %29 = vector.load %arg3[%c0_23, %c0_24] : memref<1x64xf32, #tpu.memory_space<vmem>>, vector<1x64xf32>
    %30 = vector.broadcast %29 : vector<1x64xf32> to vector<8x64xf32>
    %31 = arith.addf %28, %30 : vector<8x64xf32>
    %cst_25 = arith.constant 0.000000e+00 : f32
    %32 = vector.broadcast %cst_25 : f32 to vector<8x64xf32>
    %33 = arith.maximumf %31, %32 : vector<8x64xf32>
    %c1_26 = arith.constant 1 : index
    %c0_27 = arith.constant 0 : index
    %34 = vector.load %arg9[%c1_26, %c0_27] : memref<10x64xf32, #tpu.memory_space<vmem>>, vector<8x64xf32>
    tpu.vector_store %arg9[%c1_26, %c0_27], %33 {strides = array<i32>} : memref<10x64xf32, #tpu.memory_space<vmem>>, vector<8x64xf32>,
    %35 = vector.extract_strided_slice %33 {offsets = [1, 0], sizes = [1, 64], strides = [1, 1]} : vector<8x64xf32> to vector<1x64xf32>
    %c0_28 = arith.constant 0 : index
    %c0_29 = arith.constant 0 : index
    %36 = vector.load %arg9[%c0_28, %c0_29] : memref<10x64xf32, #tpu.memory_space<vmem>>, vector<1x64xf32>
    tpu.vector_store %arg9[%c0_28, %c0_29], %35 {strides = array<i32>} : memref<10x64xf32, #tpu.memory_space<vmem>>, vector<1x64xf32>,
    %37 = vector.extract_strided_slice %33 {offsets = [6, 0], sizes = [1, 64], strides = [1, 1]} : vector<8x64xf32> to vector<1x64xf32>
    %c9_30 = arith.constant 9 : index
    %c0_31 = arith.constant 0 : index
    %38 = vector.load %arg9[%c9_30, %c0_31] : memref<10x64xf32, #tpu.memory_space<vmem>>, vector<1x64xf32>
    tpu.vector_store %arg9[%c9_30, %c0_31], %37 {strides = array<i32>} : memref<10x64xf32, #tpu.memory_space<vmem>>, vector<1x64xf32>,
    %cst_32 = arith.constant 0.000000e+00 : f32
    %39 = vector.broadcast %cst_32 : f32 to vector<8x64xf32>
    %c0_33 = arith.constant 0 : index
    %c0_34 = arith.constant 0 : index
    %40 = vector.load %arg9[%c0_33, %c0_34] : memref<10x64xf32, #tpu.memory_space<vmem>>, vector<8x64xf32>
    %41 = arith.truncf %40 : vector<8x64xf32> to vector<8x64xbf16>
    %c0_35 = arith.constant 0 : index
    %c0_36 = arith.constant 0 : index
    %c0_37 = arith.constant 0 : index
    %42 = vector.load %arg4[%c0_35, %c0_36, %c0_37] : memref<3x64x64xbf16, #tpu.memory_space<vmem>>, vector<1x64x64xbf16>
    %43 = vector.shape_cast %42 : vector<1x64x64xbf16> to vector<64x64xbf16>
    %cst_38 = arith.constant dense<0.000000e+00> : vector<8x64xf32>
    %44 = tpu.matmul %41, %43, %cst_38 {dimension_numbers = #tpu.dot_dimension_numbers<[1], [0], [0], [1], [0, 0, 1, 1], [], []>} : vector<8x64xbf16>, vector<64x64xbf16>, vector<8x64xf32> -> vector<8x64xf32>
    %45 = arith.addf %39, %44 : vector<8x64xf32>
    %c1_39 = arith.constant 1 : index
    %c0_40 = arith.constant 0 : index
    %46 = vector.load %arg9[%c1_39, %c0_40] : memref<10x64xf32, #tpu.memory_space<vmem>>, vector<8x64xf32>
    %47 = arith.truncf %46 : vector<8x64xf32> to vector<8x64xbf16>
    %c1_41 = arith.constant 1 : index
    %c0_42 = arith.constant 0 : index
    %c0_43 = arith.constant 0 : index
    %48 = vector.load %arg4[%c1_41, %c0_42, %c0_43] : memref<3x64x64xbf16, #tpu.memory_space<vmem>>, vector<1x64x64xbf16>
    %49 = vector.shape_cast %48 : vector<1x64x64xbf16> to vector<64x64xbf16>
    %cst_44 = arith.constant dense<0.000000e+00> : vector<8x64xf32>
    %50 = tpu.matmul %47, %49, %cst_44 {dimension_numbers = #tpu.dot_dimension_numbers<[1], [0], [0], [1], [0, 0, 1, 1], [], []>} : vector<8x64xbf16>, vector<64x64xbf16>, vector<8x64xf32> -> vector<8x64xf32>
    %51 = arith.addf %45, %50 : vector<8x64xf32>
    %c2_45 = arith.constant 2 : index
    %c0_46 = arith.constant 0 : index
    %52 = vector.load %arg9[%c2_45, %c0_46] : memref<10x64xf32, #tpu.memory_space<vmem>>, vector<8x64xf32>
    %53 = arith.truncf %52 : vector<8x64xf32> to vector<8x64xbf16>
    %c2_47 = arith.constant 2 : index
    %c0_48 = arith.constant 0 : index
    %c0_49 = arith.constant 0 : index
    %54 = vector.load %arg4[%c2_47, %c0_48, %c0_49] : memref<3x64x64xbf16, #tpu.memory_space<vmem>>, vector<1x64x64xbf16>
    %55 = vector.shape_cast %54 : vector<1x64x64xbf16> to vector<64x64xbf16>
    %cst_50 = arith.constant dense<0.000000e+00> : vector<8x64xf32>
    %56 = tpu.matmul %53, %55, %cst_50 {dimension_numbers = #tpu.dot_dimension_numbers<[1], [0], [0], [1], [0, 0, 1, 1], [], []>} : vector<8x64xbf16>, vector<64x64xbf16>, vector<8x64xf32> -> vector<8x64xf32>
    %57 = arith.addf %51, %56 : vector<8x64xf32>
    %c1_51 = arith.constant 1 : index
    %c0_52 = arith.constant 0 : index
    %58 = vector.load %arg8[%c1_51, %c0_52] : memref<10x64xf32, #tpu.memory_space<vmem>>, vector<8x64xf32>
    %59 = arith.truncf %58 : vector<8x64xf32> to vector<8x64xbf16>
    %c0_53 = arith.constant 0 : index
    %c0_54 = arith.constant 0 : index
    %60 = vector.load %arg5[%c0_53, %c0_54] : memref<64x64xbf16, #tpu.memory_space<vmem>>, vector<64x64xbf16>
    %cst_55 = arith.constant dense<0.000000e+00> : vector<8x64xf32>
    %61 = tpu.matmul %59, %60, %cst_55 {dimension_numbers = #tpu.dot_dimension_numbers<[1], [0], [0], [1], [0, 0, 1, 1], [], []>} : vector<8x64xbf16>, vector<64x64xbf16>, vector<8x64xf32> -> vector<8x64xf32>
    %62 = arith.addf %57, %61 : vector<8x64xf32>
    %c0_56 = arith.constant 0 : index
    %c0_57 = arith.constant 0 : index
    %63 = vector.load %arg6[%c0_56, %c0_57] : memref<1x64xf32, #tpu.memory_space<vmem>>, vector<1x64xf32>
    %64 = vector.broadcast %63 : vector<1x64xf32> to vector<8x64xf32>
    %65 = arith.addf %62, %64 : vector<8x64xf32>
    %cst_58 = arith.constant 0.000000e+00 : f32
    %66 = vector.broadcast %cst_58 : f32 to vector<8x64xf32>
    %67 = arith.maximumf %65, %66 : vector<8x64xf32>
    %c0_59 = arith.constant 0 : index
    %c0_60 = arith.constant 0 : index
    %c0_61 = arith.constant 0 : index
    %68 = vector.load %arg7[%c0_59, %c0_60, %c0_61] : memref<1x8x64xf32, #tpu.memory_space<vmem>>, vector<1x8x64xf32>
    %69 = vector.shape_cast %68 : vector<1x8x64xf32> to vector<8x64xf32>
    %70 = vector.shape_cast %67 : vector<8x64xf32> to vector<1x8x64xf32>
    tpu.vector_store %arg7[%c0_59, %c0_60, %c0_61], %70 {strides = array<i32>} : memref<1x8x64xf32, #tpu.memory_space<vmem>>, vector<1x8x64xf32>,
    return
  }
  func.func @transform_0(%arg0: i32) -> (i32, i32, i32) {
    %c0_i32 = arith.constant 0 : i32
    %c0_i32_0 = arith.constant 0 : i32
    %c0_i32_1 = arith.constant 0 : i32
    return %arg0, %c0_i32, %c0_i32_0 : i32, i32, i32
  }
  func.func @transform_1(%arg0: i32) -> (i32, i32, i32) {
    %c0_i32 = arith.constant 0 : i32
    %c0_i32_0 = arith.constant 0 : i32
    %c0_i32_1 = arith.constant 0 : i32
    %c0_i32_2 = arith.constant 0 : i32
    return %c0_i32, %c0_i32_0, %c0_i32_1 : i32, i32, i32
  }
  func.func @transform_2(%arg0: i32) -> (i32, i32) {
    %c0_i32 = arith.constant 0 : i32
    %c0_i32_0 = arith.constant 0 : i32
    %c0_i32_1 = arith.constant 0 : i32
    return %c0_i32, %c0_i32_0 : i32, i32
  }
  func.func @transform_3(%arg0: i32) -> (i32, i32, i32) {
    %c0_i32 = arith.constant 0 : i32
    %c0_i32_0 = arith.constant 0 : i32
    %c0_i32_1 = arith.constant 0 : i32
    %c0_i32_2 = arith.constant 0 : i32
    return %c0_i32, %c0_i32_0, %c0_i32_1 : i32, i32, i32
  }
  func.func @transform_4(%arg0: i32) -> (i32, i32) {
    %c0_i32 = arith.constant 0 : i32
    %c0_i32_0 = arith.constant 0 : i32
    %c0_i32_1 = arith.constant 0 : i32
    return %c0_i32, %c0_i32_0 : i32, i32
  }
  func.func @transform_5(%arg0: i32) -> (i32, i32) {
    %c0_i32 = arith.constant 0 : i32
    %c0_i32_0 = arith.constant 0 : i32
    %c0_i32_1 = arith.constant 0 : i32
    return %c0_i32, %c0_i32_0 : i32, i32
  }
  func.func @transform_6(%arg0: i32) -> (i32, i32, i32) {
    %c0_i32 = arith.constant 0 : i32
    %c0_i32_0 = arith.constant 0 : i32
    %c0_i32_1 = arith.constant 0 : i32
    return %arg0, %c0_i32, %c0_i32_0 : i32, i32, i32
  }
}

</mosaic_0001>

<llo_original>
// kernel: _lambda_.3
$region0: #{_lambda_.3}
  #allocation0 [shape = 'u32[]', space=smem, size = 0x4, offset = 0x4, fixed_abs, tag = 'smem constant byte address 0x4 - core index']
  #allocation1 [shape = 'u32[72,128]{1,0:T(1,128)}', space=vmem, size = 0x9000, scoped, tag = 'internal scratch']
  #allocation2 [shape = 'f32[10,64]{1,0:T(8,128)}', space=vmem, size = 0x2000, scoped, tag = 'scratch operand']
  #allocation3 [shape = 'f32[10,64]{1,0:T(8,128)}', space=vmem, size = 0x2000, scoped, tag = 'scratch operand']
  %s0 = inlined_call_operand.vmem [shape: bf16[2,8,64], index: 0, kind: input, shape index: {}]
  %s1 = inlined_call_operand.vmem [shape: bf16[3,64,64], index: 1, kind: input, shape index: {}]
  %s2 = inlined_call_operand.vmem [shape: f32[1,64], index: 2, kind: input, shape index: {}]
  %s3 = inlined_call_operand.vmem [shape: bf16[3,64,64], index: 3, kind: input, shape index: {}]
  %s4 = inlined_call_operand.vmem [shape: bf16[64,64], index: 4, kind: input, shape index: {}]
  %s5 = inlined_call_operand.vmem [shape: f32[1,64], index: 5, kind: input, shape index: {}]
  %s6 = inlined_call_operand.vmem [shape: f32[2,8,64], index: 6, kind: output, shape index: {}]
  %s7 = sld [smem:[#allocation0]]
  $region57: #{_lambda_.3} parent=0
    _
  %s9 = ssub.s32 1, %s7
  %s10 = scalar_select 0, %s9, %s7
  loop: start=0, step=1, limit=4
  $region2: #{_lambda_.3} parent=0 // loop_pre_header
    _
  $region3: #{_lambda_.3} parent=0 // loop_header
    %s12 = sphi 0, %s16
    %p13 = scmp.ge.s32.totalorder %s12, 4
    %s22 = sphi 0, %s24
    %s25 = sphi 0, %s22
    %s26 = sphi 0, %s25
    %s42 = sphi 0, %s26
    %s46 = sphi 0, %s46
    %s48 = sphi 0, %s46
    %s49 = sphi 0, %s48
    %s63 = sphi 0, %s49
    %s67 = sphi 0, %s67
    %s69 = sphi 0, %s67
    %s70 = sphi 0, %s69
    %s84 = sphi 0, %s70
    %s88 = sphi 0, %s88
    %s90 = sphi 0, %s88
    %s91 = sphi 0, %s90
    %s105 = sphi 0, %s91
    %s109 = sphi 0, %s109
    %s111 = sphi 0, %s109
    %s112 = sphi 0, %s111
    %s126 = sphi 0, %s112
    %s130 = sphi 0, %s130
    %s132 = sphi 0, %s130
    %s133 = sphi 0, %s132
    %s147 = sphi 0, %s133
    %s153 = sphi 0, %s155
    %s156 = sphi 0, %s153
    %s157 = sphi 0, %s156
    %s173 = sphi 0, %s157
  $region4: #{_lambda_.3} parent=0 // loop_header_branch
    %15 = sbr.rel (%p13) target = $region8
  $region5: #{_lambda_.3} parent=0 // loop_body
    %s17 = ssub.s32 %s12, 1
    %s18 = ssub.s32 %s12, 2
    %s19 = sadd.s32 %s12, 1
    %s20 = ssub.s32 %s12, %s19
    %p21 = scmp.eq.s32.totalorder %s20, 0
    %s23 = sadd.s32 %s22, 1
    %s24 = scalar_select %p21, %s22, %s23
    %p27 = pneg %p21
    %p28 = scmp.eq.s32.totalorder %s12, 1
    %p29 = por %p27, %p28
    %p30 = scmp.ne.s32.totalorder %s22, %s25
    %p31 = scmp.eq.s32.totalorder %s12, 0
    %p32 = por %p30, %p31
    %p33 = scmp.ne.s32.totalorder %s22, %s25
    %p34 = scmp.eq.s32.totalorder %s17, 1
    %p35 = por %p33, %p34
    %p36 = scmp.ne.s32.totalorder %s25, %s26
    %p37 = scmp.eq.s32.totalorder %s17, 0
    %p38 = por %p36, %p37
    %p39 = scmp.ne.s32.totalorder %s25, %s26
    %p40 = scmp.eq.s32.totalorder %s18, 1
    %p41 = por %p39, %p40
    %p43 = scmp.ne.s32.totalorder %s26, %s42
    %p44 = scmp.eq.s32.totalorder %s18, 0
    %p45 = por %p43, %p44
    %s47 = sadd.s32 %s46, 1
    %p50 = scmp.eq.s32.totalorder %s12, 1
    %p51 = scmp.ne.s32.totalorder %s46, %s48
    %p52 = scmp.eq.s32.totalorder %s12, 0
    %p53 = por %p51, %p52
    %p54 = scmp.ne.s32.totalorder %s46, %s48
    %p55 = scmp.eq.s32.totalorder %s17, 1
    %p56 = por %p54, %p55
    %p57 = scmp.ne.s32.totalorder %s48, %s49
    %p58 = scmp.eq.s32.totalorder %s17, 0
    %p59 = por %p57, %p58
    %p60 = scmp.ne.s32.totalorder %s48, %s49
    %p61 = scmp.eq.s32.totalorder %s18, 1
    %p62 = por %p60, %p61
    %p64 = scmp.ne.s32.totalorder %s49, %s63
    %p65 = scmp.eq.s32.totalorder %s18, 0
    %p66 = por %p64, %p65
    %s68 = sadd.s32 %s67, 1
    %p71 = scmp.eq.s32.totalorder %s12, 1
    %p72 = scmp.ne.s32.totalorder %s67, %s69
    %p73 = scmp.eq.s32.totalorder %s12, 0
    %p74 = por %p72, %p73
    %p75 = scmp.ne.s32.totalorder %s67, %s69
    %p76 = scmp.eq.s32.totalorder %s17, 1
    %p77 = por %p75, %p76
    %p78 = scmp.ne.s32.totalorder %s69, %s70
    %p79 = scmp.eq.s32.totalorder %s17, 0
    %p80 = por %p78, %p79
    %p81 = scmp.ne.s32.totalorder %s69, %s70
    %p82 = scmp.eq.s32.totalorder %s18, 1
    %p83 = por %p81, %p82
    %p85 = scmp.ne.s32.totalorder %s70, %s84
    %p86 = scmp.eq.s32.totalorder %s18, 0
    %p87 = por %p85, %p86
    %s89 = sadd.s32 %s88, 1
    %p92 = scmp.eq.s32.totalorder %s12, 1
    %p93 = scmp.ne.s32.totalorder %s88, %s90
    %p94 = scmp.eq.s32.totalorder %s12, 0
    %p95 = por %p93, %p94
    %p96 = scmp.ne.s32.totalorder %s88, %s90
    %p97 = scmp.eq.s32.totalorder %s17, 1
    %p98 = por %p96, %p97
    %p99 = scmp.ne.s32.totalorder %s90, %s91
    %p100 = scmp.eq.s32.totalorder %s17, 0
    %p101 = por %p99, %p100
    %p102 = scmp.ne.s32.totalorder %s90, %s91
    %p103 = scmp.eq.s32.totalorder %s18, 1
    %p104 = por %p102, %p103
    %p106 = scmp.ne.s32.totalorder %s91, %s105
    %p107 = scmp.eq.s32.totalorder %s18, 0
    %p108 = por %p106, %p107
    %s110 = sadd.s32 %s109, 1
    %p113 = scmp.eq.s32.totalorder %s12, 1
    %p114 = scmp.ne.s32.totalorder %s109, %s111
    %p115 = scmp.eq.s32.totalorder %s12, 0
    %p116 = por %p114, %p115
    %p117 = scmp.ne.s32.totalorder %s109, %s111
    %p118 = scmp.eq.s32.totalorder %s17, 1
    %p119 = por %p117, %p118
    %p120 = scmp.ne.s32.totalorder %s111, %s112
    %p121 = scmp.eq.s32.totalorder %s17, 0
    %p122 = por %p120, %p121
    %p123 = scmp.ne.s32.totalorder %s111, %s112
    %p124 = scmp.eq.s32.totalorder %s18, 1
    %p125 = por %p123, %p124
    %p127 = scmp.ne.s32.totalorder %s112, %s126
    %p128 = scmp.eq.s32.totalorder %s18, 0
    %p129 = por %p127, %p128
    %s131 = sadd.s32 %s130, 1
    %p134 = scmp.eq.s32.totalorder %s12, 1
    %p135 = scmp.ne.s32.totalorder %s130, %s132
    %p136 = scmp.eq.s32.totalorder %s12, 0
    %p137 = por %p135, %p136
    %p138 = scmp.ne.s32.totalorder %s130, %s132
    %p139 = scmp.eq.s32.totalorder %s17, 1
    %p140 = por %p138, %p139
    %p141 = scmp.ne.s32.totalorder %s132, %s133
    %p142 = scmp.eq.s32.totalorder %s17, 0
    %p143 = por %p141, %p142
    %p144 = scmp.ne.s32.totalorder %s132, %s133
    %p145 = scmp.eq.s32.totalorder %s18, 1
    %p146 = por %p144, %p145
    %p148 = scmp.ne.s32.totalorder %s133, %s147
    %p149 = scmp.eq.s32.totalorder %s18, 0
    %p150 = por %p148, %p149
    %s151 = ssub.s32 %s12, %s19
    %p152 = scmp.eq.s32.totalorder %s151, 0
    %s154 = sadd.s32 %s153, 1
    %s155 = scalar_select %p152, %s153, %s154
    %p158 = pneg %p152
    %p159 = scmp.eq.s32.totalorder %s12, 1
    %p160 = por %p158, %p159
    %p161 = scmp.ne.s32.totalorder %s153, %s156
    %p162 = scmp.eq.s32.totalorder %s12, 0
    %p163 = por %p161, %p162
    %p164 = scmp.ne.s32.totalorder %s153, %s156
    %p165 = scmp.eq.s32.totalorder %s17, 1
    %p166 = por %p164, %p165
    %p167 = scmp.ne.s32.totalorder %s156, %s157
    %p168 = scmp.eq.s32.totalorder %s17, 0
    %p169 = por %p167, %p168
    %p170 = scmp.ne.s32.totalorder %s156, %s157
    %p171 = scmp.eq.s32.totalorder %s18, 1
    %p172 = por %p170, %p171
    %p174 = scmp.ne.s32.totalorder %s157, %s173
    %p175 = scmp.eq.s32.totalorder %s18, 0
    %p176 = por %p174, %p175
    %p177 = scmp.le.s32.totalorder 1, %s12
    %p178 = scmp.lt.s32.totalorder %s12, 3
    %p179 = pnand %p177, %p178
    %p180 = pneg %p179
    // Predicated region
    $region9: #{_lambda_.3} parent=5 // pred_check
      _
    $region10: #{_lambda_.3} parent=5 // pred_check_branch
      %182 = sbr.rel (%p179) target = $region12
    $region11: #{_lambda_.3} parent=5 // pred_region
      %s183 = ssub.s32 %s12, 1
      // Predicated region
      $region13: #{_lambda_.3} parent=11 // pred_check
        %p184 = pneg %p59
      $region14: #{_lambda_.3} parent=11 // pred_check_branch
        %186 = sbr.rel (%p184) target = $region16
      $region15: #{_lambda_.3} parent=11 // pred_region
        _
      $region16: #{_lambda_.3} parent=11 // pred_fallthru
        _
      // Predicated region
      $region17: #{_lambda_.3} parent=11 // pred_check
        %p187 = pneg %p80
      $region18: #{_lambda_.3} parent=11 // pred_check_branch
        %189 = sbr.rel (%p187) target = $region20
      $region19: #{_lambda_.3} parent=11 // pred_region
        _
      $region20: #{_lambda_.3} parent=11 // pred_fallthru
        _
      // Predicated region
      $region21: #{_lambda_.3} parent=11 // pred_check
        %p190 = pneg %p101
      $region22: #{_lambda_.3} parent=11 // pred_check_branch
        %192 = sbr.rel (%p190) target = $region24
      $region23: #{_lambda_.3} parent=11 // pred_region
        _
      $region24: #{_lambda_.3} parent=11 // pred_fallthru
        _
      // Predicated region
      $region25: #{_lambda_.3} parent=11 // pred_check
        %p193 = pneg %p122
      $region26: #{_lambda_.3} parent=11 // pred_check_branch
        %195 = sbr.rel (%p193) target = $region28
      $region27: #{_lambda_.3} parent=11 // pred_region
        _
      $region28: #{_lambda_.3} parent=11 // pred_fallthru
        _
      // Predicated region
      $region29: #{_lambda_.3} parent=11 // pred_check
        %p196 = pneg %p143
      $region30: #{_lambda_.3} parent=11 // pred_check_branch
        %198 = sbr.rel (%p196) target = $region32
      $region31: #{_lambda_.3} parent=11 // pred_region
        _
      $region32: #{_lambda_.3} parent=11 // pred_fallthru
        _
    $region12: #{_lambda_.3} parent=5 // pred_fallthru
      _
    %p199 = scmp.lt.s32.totalorder %s12, 2
    // Predicated region
    $region33: #{_lambda_.3} parent=5 // pred_check
      %p200 = pneg %p199
    $region34: #{_lambda_.3} parent=5 // pred_check_branch
      %202 = sbr.rel (%p200) target = $region36
    $region35: #{_lambda_.3} parent=5 // pred_region
      // Predicated region
      $region37: #{_lambda_.3} parent=35 // pred_check
        %p203 = pneg %p32
      $region38: #{_lambda_.3} parent=35 // pred_check_branch
        %205 = sbr.rel (%p203) target = $region40
      $region39: #{_lambda_.3} parent=35 // pred_region
        %p206 = scmp.lt.s32.totalorder %s12, 1
        %s207 = scalar_select %p206, %s12, 1
        %s208 = smul.addr %s207, 4
        %s209 = scalar_lea.vmem %s0, %s208
      $region40: #{_lambda_.3} parent=35 // pred_fallthru
        _
    $region36: #{_lambda_.3} parent=5 // pred_fallthru
      _
    %p210 = scmp.le.s32.totalorder 1, %s12
    %p211 = scmp.lt.s32.totalorder %s12, 3
    %p212 = pnand %p210, %p211
    %p213 = pneg %p212
    // Predicated region
    $region41: #{_lambda_.3} parent=5 // pred_check
      _
    $region42: #{_lambda_.3} parent=5 // pred_check_branch
      %215 = sbr.rel (%p212) target = $region44
    $region43: #{_lambda_.3} parent=5 // pred_region
      %s216 = ssub.s32 %s12, 1
      %p217 = scmp.lt.s32.totalorder %s17, 1
      %s218 = scalar_select %p217, %s17, 1
      %s219 = smul.addr %s218, 4
      %s220 = scalar_lea.vmem %s0, %s219
      %p221 = pneg %p38
      %p222 = pneg %p35
      %p223 = pneg %p59
      %p224 = pneg %p56
      %p225 = pneg %p80
      %p226 = pneg %p77
      %p227 = pneg %p101
      %p228 = pneg %p98
      %p229 = pneg %p122
      %p230 = pneg %p119
      %p231 = pneg %p143
      %p232 = pneg %p140
      %p233 = pneg %p169
      %p234 = pneg %p166
      %p235 = scmp.lt.s32.totalorder %s17, 1
      %s236 = scalar_select %p235, %s17, 1
      %s237 = smul.addr %s236, 8
      %s238 = scalar_lea.vmem %s6, %s237
      %p239 = scmp.lt.s32.totalorder %s17, 1
      %s240 = scalar_select %p239, %s17, 1
      %s241 = smul.addr %s240, 4
      %s242 = scalar_lea.vmem %s0, %s241
      %p243 = scmp.lt.s32.totalorder %s17, 1
      %s244 = scalar_select %p243, %s17, 1
      %s245 = smul.addr %s244, 8
      %s246 = scalar_lea.vmem %s6, %s245
      %v248 = vld [vmem:[%s242] sm:$0xf]
      %v249 = vunpack.c.l.bf16 %v248
      %vm250 = vcmask 523264
      %251 = vst.msk [vmem:[#allocation2 + $0x1] sm:$0xff] %vm250, %v249
      %vm252 = vcmask 517121
      %253 = vst.msk [vmem:[#allocation2 - $0x1] sm:$0x2] %vm252, %v249
      %vm254 = vcmask 522246
      %255 = vst.msk [vmem:[#allocation2 + $0x3] sm:$0x40] %vm254, %v249
      %v256 = vld [vmem:[#allocation2] sm:$0xff]
      %v257 = vpack.c.bf16 %v256, %v256
      %v258 = vld [vmem:[%s1] sm:$0xf]
      %v259 = vld [vmem:[%s1 + $0x4] sm:$0xf]
      %v260 = vld [vmem:[%s1 + $0x8] sm:$0xf]
      %v261 = vld [vmem:[%s1 + $0xc] sm:$0xf]
      %v262 = vld [vmem:[%s1 + $0x10] sm:$0xf]
      %v263 = vld [vmem:[%s1 + $0x14] sm:$0xf]
      %v264 = vld [vmem:[%s1 + $0x18] sm:$0xf]
      %v265 = vld [vmem:[%s1 + $0x1c] sm:$0xf]
      %v266 = vld [vmem:[#allocation2 + $0x1] sm:$0xff]
      %v267 = vpack.c.bf16 %v266, %v266
      %s268 = scalar_lea.vmem %s1, 32
      %v269 = vld [vmem:[%s268] sm:$0xf]
      %v270 = vld [vmem:[%s268 + $0x4] sm:$0xf]
      %v271 = vld [vmem:[%s268 + $0x8] sm:$0xf]
      %v272 = vld [vmem:[%s268 + $0xc] sm:$0xf]
      %v273 = vld [vmem:[%s268 + $0x10] sm:$0xf]
      %v274 = vld [vmem:[%s268 + $0x14] sm:$0xf]
      %v275 = vld [vmem:[%s268 + $0x18] sm:$0xf]
      %v276 = vld [vmem:[%s268 + $0x1c] sm:$0xf]
      %v285 = vunpack.c.l.b16 %v269
      %v286 = vunpack.c.l.b16 %v270
      %v287 = vunpack.c.l.b16 %v271
      %v288 = vunpack.c.l.b16 %v272
      %v289 = vunpack.c.l.b16 %v273
      %v290 = vunpack.c.l.b16 %v274
      %v291 = vunpack.c.l.b16 %v275
      %v292 = vunpack.c.l.b16 %v276
      %v293 = vpack.c.b16 %v286, %v285
      %v294 = vpack.c.b16 %v288, %v287
      %v295 = vpack.c.b16 %v290, %v289
      %v296 = vpack.c.b16 %v292, %v291
      %v302 = vsel %vm250, %v267, 0
      %304 = vmatpush.bf16.msra.mxu0 0
      %305 = vmatpush.bf16.msra.mxu0 0
      %306 = vmatpush.bf16.msra.mxu0 0
      %307 = vmatpush.bf16.msra.mxu0 0
      %308 = vmatpush.bf16.msra.mxu0 %v296
      %309 = vmatpush.bf16.msra.mxu0 %v295
      %310 = vmatpush.bf16.msra.mxu0 %v294
      %311 = vmatpush.bf16.msra.mxu0 %v293
      %312 = vmatmul.bf16.gmra.mxu0 %v302
      %v313 = vpop.f32.mrf.mxu0
      %v314 = vadd.f32 0.0, %v313
      %v315 = vpop.f32.mrf.mxu0
      %316 = vdwg.mxu0
      %v325 = vunpack.c.l.b16 %v258
      %v326 = vunpack.c.l.b16 %v259
      %v327 = vunpack.c.l.b16 %v260
      %v328 = vunpack.c.l.b16 %v261
      %v329 = vunpack.c.l.b16 %v262
      %v330 = vunpack.c.l.b16 %v263
      %v331 = vunpack.c.l.b16 %v264
      %v332 = vunpack.c.l.b16 %v265
      %v333 = vpack.c.b16 %v326, %v325
      %v334 = vpack.c.b16 %v328, %v327
      %v335 = vpack.c.b16 %v330, %v329
      %v336 = vpack.c.b16 %v332, %v331
      %v342 = vsel %vm250, %v257, 0
      %344 = vmatpush.bf16.msra.mxu0 0
      %345 = vmatpush.bf16.msra.mxu0 0
      %346 = vmatpush.bf16.msra.mxu0 0
      %347 = vmatpush.bf16.msra.mxu0 0
      %348 = vmatpush.bf16.msra.mxu0 %v336
      %349 = vmatpush.bf16.msra.mxu0 %v335
      %350 = vmatpush.bf16.msra.mxu0 %v334
      %351 = vmatpush.bf16.msra.mxu0 %v333
      %352 = vmatmul.bf16.gmra.mxu0 %v342
      %v353 = vpop.f32.mrf.mxu0
      %v354 = vadd.f32 %v314, %v353
      %v355 = vpop.f32.mrf.mxu0
      %356 = vdwg.mxu0
      %v357 = vld [vmem:[#allocation2 + $0x2] sm:$0xff]
      %v358 = vpack.c.bf16 %v357, %v357
      %s359 = scalar_lea.vmem %s1, 64
      %v360 = vld [vmem:[%s359] sm:$0xf]
      %v361 = vld [vmem:[%s359 + $0x4] sm:$0xf]
      %v362 = vld [vmem:[%s359 + $0x8] sm:$0xf]
      %v363 = vld [vmem:[%s359 + $0xc] sm:$0xf]
      %v364 = vld [vmem:[%s359 + $0x10] sm:$0xf]
      %v365 = vld [vmem:[%s359 + $0x14] sm:$0xf]
      %v366 = vld [vmem:[%s359 + $0x18] sm:$0xf]
      %v367 = vld [vmem:[%s359 + $0x1c] sm:$0xf]
      %v376 = vunpack.c.l.b16 %v360
      %v377 = vunpack.c.l.b16 %v361
      %v378 = vunpack.c.l.b16 %v362
      %v379 = vunpack.c.l.b16 %v363
      %v380 = vunpack.c.l.b16 %v364
      %v381 = vunpack.c.l.b16 %v365
      %v382 = vunpack.c.l.b16 %v366
      %v383 = vunpack.c.l.b16 %v367
      %v384 = vpack.c.b16 %v377, %v376
      %v385 = vpack.c.b16 %v379, %v378
      %v386 = vpack.c.b16 %v381, %v380
      %v387 = vpack.c.b16 %v383, %v382
      %v393 = vsel %vm250, %v358, 0
      %395 = vmatpush.bf16.msra.mxu0 0
      %396 = vmatpush.bf16.msra.mxu0 0
      %397 = vmatpush.bf16.msra.mxu0 0
      %398 = vmatpush.bf16.msra.mxu0 0
      %399 = vmatpush.bf16.msra.mxu0 %v387
      %400 = vmatpush.bf16.msra.mxu0 %v386
      %401 = vmatpush.bf16.msra.mxu0 %v385
      %402 = vmatpush.bf16.msra.mxu0 %v384
      %403 = vmatmul.bf16.gmra.mxu0 %v393
      %v404 = vpop.f32.mrf.mxu0
      %v405 = vadd.f32 0.0, %v404
      %v406 = vpop.f32.mrf.mxu0
      %407 = vdwg.mxu0
      %v408 = vadd.f32 %v354, %v405
      %v409 = vld [vmem:[%s2] sm:$0x1]
      %v411 = vperm.slane %v409, 0
      %v413 = vadd.f32 %v408, %v411
      %v414 = vmax.f32 %v413, 0.0
      %415 = vst.msk [vmem:[#allocation3 + $0x1] sm:$0xff] %vm250, %v414
      %416 = vst.msk [vmem:[#allocation3 - $0x1] sm:$0x2] %vm252, %v414
      %417 = vst.msk [vmem:[#allocation3 + $0x3] sm:$0x40] %vm254, %v414
      %v418 = vld [vmem:[#allocation3] sm:$0xff]
      %v419 = vpack.c.bf16 %v418, %v418
      %v420 = vld [vmem:[%s3] sm:$0xf]
      %v421 = vld [vmem:[%s3 + $0x4] sm:$0xf]
      %v422 = vld [vmem:[%s3 + $0x8] sm:$0xf]
      %v423 = vld [vmem:[%s3 + $0xc] sm:$0xf]
      %v424 = vld [vmem:[%s3 + $0x10] sm:$0xf]
      %v425 = vld [vmem:[%s3 + $0x14] sm:$0xf]
      %v426 = vld [vmem:[%s3 + $0x18] sm:$0xf]
      %v427 = vld [vmem:[%s3 + $0x1c] sm:$0xf]
      %v428 = vld [vmem:[#allocation3 + $0x1] sm:$0xff]
      %v429 = vpack.c.bf16 %v428, %v428
      %s430 = scalar_lea.vmem %s3, 32
      %v431 = vld [vmem:[%s430] sm:$0xf]
      %v432 = vld [vmem:[%s430 + $0x4] sm:$0xf]
      %v433 = vld [vmem:[%s430 + $0x8] sm:$0xf]
      %v434 = vld [vmem:[%s430 + $0xc] sm:$0xf]
      %v435 = vld [vmem:[%s430 + $0x10] sm:$0xf]
      %v436 = vld [vmem:[%s430 + $0x14] sm:$0xf]
      %v437 = vld [vmem:[%s430 + $0x18] sm:$0xf]
      %v438 = vld [vmem:[%s430 + $0x1c] sm:$0xf]
      %v447 = vunpack.c.l.b16 %v431
      %v448 = vunpack.c.l.b16 %v432
      %v449 = vunpack.c.l.b16 %v433
      %v450 = vunpack.c.l.b16 %v434
      %v451 = vunpack.c.l.b16 %v435
      %v452 = vunpack.c.l.b16 %v436
      %v453 = vunpack.c.l.b16 %v437
      %v454 = vunpack.c.l.b16 %v438
      %v455 = vpack.c.b16 %v448, %v447
      %v456 = vpack.c.b16 %v450, %v449
      %v457 = vpack.c.b16 %v452, %v451
      %v458 = vpack.c.b16 %v454, %v453
      %v464 = vsel %vm250, %v429, 0
      %466 = vmatpush.bf16.msra.mxu0 0
      %467 = vmatpush.bf16.msra.mxu0 0
      %468 = vmatpush.bf16.msra.mxu0 0
      %469 = vmatpush.bf16.msra.mxu0 0
      %470 = vmatpush.bf16.msra.mxu0 %v458
      %471 = vmatpush.bf16.msra.mxu0 %v457
      %472 = vmatpush.bf16.msra.mxu0 %v456
      %473 = vmatpush.bf16.msra.mxu0 %v455
      %474 = vmatmul.bf16.gmra.mxu0 %v464
      %v475 = vpop.f32.mrf.mxu0
      %v476 = vadd.f32 0.0, %v475
      %v477 = vpop.f32.mrf.mxu0
      %478 = vdwg.mxu0
      %v487 = vunpack.c.l.b16 %v420
      %v488 = vunpack.c.l.b16 %v421
      %v489 = vunpack.c.l.b16 %v422
      %v490 = vunpack.c.l.b16 %v423
      %v491 = vunpack.c.l.b16 %v424
      %v492 = vunpack.c.l.b16 %v425
      %v493 = vunpack.c.l.b16 %v426
      %v494 = vunpack.c.l.b16 %v427
      %v495 = vpack.c.b16 %v488, %v487
      %v496 = vpack.c.b16 %v490, %v489
      %v497 = vpack.c.b16 %v492, %v491
      %v498 = vpack.c.b16 %v494, %v493
      %v504 = vsel %vm250, %v419, 0
      %506 = vmatpush.bf16.msra.mxu0 0
      %507 = vmatpush.bf16.msra.mxu0 0
      %508 = vmatpush.bf16.msra.mxu0 0
      %509 = vmatpush.bf16.msra.mxu0 0
      %510 = vmatpush.bf16.msra.mxu0 %v498
      %511 = vmatpush.bf16.msra.mxu0 %v497
      %512 = vmatpush.bf16.msra.mxu0 %v496
      %513 = vmatpush.bf16.msra.mxu0 %v495
      %514 = vmatmul.bf16.gmra.mxu0 %v504
      %v515 = vpop.f32.mrf.mxu0
      %v516 = vadd.f32 %v476, %v515
      %v517 = vpop.f32.mrf.mxu0
      %518 = vdwg.mxu0
      %v519 = vld [vmem:[#allocation3 + $0x2] sm:$0xff]
      %v520 = vpack.c.bf16 %v519, %v519
      %s521 = scalar_lea.vmem %s3, 64
      %v522 = vld [vmem:[%s521] sm:$0xf]
      %v523 = vld [vmem:[%s521 + $0x4] sm:$0xf]
      %v524 = vld [vmem:[%s521 + $0x8] sm:$0xf]
      %v525 = vld [vmem:[%s521 + $0xc] sm:$0xf]
      %v526 = vld [vmem:[%s521 + $0x10] sm:$0xf]
      %v527 = vld [vmem:[%s521 + $0x14] sm:$0xf]
      %v528 = vld [vmem:[%s521 + $0x18] sm:$0xf]
      %v529 = vld [vmem:[%s521 + $0x1c] sm:$0xf]
      %v538 = vunpack.c.l.b16 %v522
      %v539 = vunpack.c.l.b16 %v523
      %v540 = vunpack.c.l.b16 %v524
      %v541 = vunpack.c.l.b16 %v525
      %v542 = vunpack.c.l.b16 %v526
      %v543 = vunpack.c.l.b16 %v527
      %v544 = vunpack.c.l.b16 %v528
      %v545 = vunpack.c.l.b16 %v529
      %v546 = vpack.c.b16 %v539, %v538
      %v547 = vpack.c.b16 %v541, %v540
      %v548 = vpack.c.b16 %v543, %v542
      %v549 = vpack.c.b16 %v545, %v544
      %v555 = vsel %vm250, %v520, 0
      %557 = vmatpush.bf16.msra.mxu0 0
      %558 = vmatpush.bf16.msra.mxu0 0
      %559 = vmatpush.bf16.msra.mxu0 0
      %560 = vmatpush.bf16.msra.mxu0 0
      %561 = vmatpush.bf16.msra.mxu0 %v549
      %562 = vmatpush.bf16.msra.mxu0 %v548
      %563 = vmatpush.bf16.msra.mxu0 %v547
      %564 = vmatpush.bf16.msra.mxu0 %v546
      %565 = vmatmul.bf16.gmra.mxu0 %v555
      %v566 = vpop.f32.mrf.mxu0
      %v567 = vadd.f32 0.0, %v566
      %v568 = vpop.f32.mrf.mxu0
      %569 = vdwg.mxu0
      %v570 = vadd.f32 %v516, %v567
      %v571 = vld [vmem:[#allocation2 + $0x1] sm:$0xff]
      %v572 = vpack.c.bf16 %v571, %v571
      %v573 = vld [vmem:[%s4] sm:$0xf]
      %v574 = vld [vmem:[%s4 + $0x4] sm:$0xf]
      %v575 = vld [vmem:[%s4 + $0x8] sm:$0xf]
      %v576 = vld [vmem:[%s4 + $0xc] sm:$0xf]
      %v577 = vld [vmem:[%s4 + $0x10] sm:$0xf]
      %v578 = vld [vmem:[%s4 + $0x14] sm:$0xf]
      %v579 = vld [vmem:[%s4 + $0x18] sm:$0xf]
      %v580 = vld [vmem:[%s4 + $0x1c] sm:$0xf]
      %v589 = vunpack.c.l.b16 %v573
      %v590 = vunpack.c.l.b16 %v574
      %v591 = vunpack.c.l.b16 %v575
      %v592 = vunpack.c.l.b16 %v576
      %v593 = vunpack.c.l.b16 %v577
      %v594 = vunpack.c.l.b16 %v578
      %v595 = vunpack.c.l.b16 %v579
      %v596 = vunpack.c.l.b16 %v580
      %v597 = vpack.c.b16 %v590, %v589
      %v598 = vpack.c.b16 %v592, %v591
      %v599 = vpack.c.b16 %v594, %v593
      %v600 = vpack.c.b16 %v596, %v595
      %v606 = vsel %vm250, %v572, 0
      %608 = vmatpush.bf16.msra.mxu0 0
      %609 = vmatpush.bf16.msra.mxu0 0
      %610 = vmatpush.bf16.msra.mxu0 0
      %611 = vmatpush.bf16.msra.mxu0 0
      %612 = vmatpush.bf16.msra.mxu0 %v600
      %613 = vmatpush.bf16.msra.mxu0 %v599
      %614 = vmatpush.bf16.msra.mxu0 %v598
      %615 = vmatpush.bf16.msra.mxu0 %v597
      %616 = vmatmul.bf16.gmra.mxu0 %v606
      %v617 = vpop.f32.mrf.mxu0
      %v618 = vadd.f32 0.0, %v617
      %v619 = vpop.f32.mrf.mxu0
      %620 = vdwg.mxu0
      %v621 = vadd.f32 %v570, %v618
      %v622 = vld [vmem:[%s5] sm:$0x1]
      %v624 = vperm.slane %v622, 0
      %v626 = vadd.f32 %v621, %v624
      %v627 = vmax.f32 %v626, 0.0
      %628 = vst.msk [vmem:[%s246] sm:$0xff] %vm250, %v627
      %p629 = scmp.lt.s32.totalorder %s17, 1
      %s630 = scalar_select %p629, %s17, 1
      %s631 = smul.addr %s630, 8
      %s632 = scalar_lea.vmem %s6, %s631
      // Predicated region
      $region45: #{_lambda_.3} parent=43 // pred_check
        %p633 = pneg %p166
      $region46: #{_lambda_.3} parent=43 // pred_check_branch
        %635 = sbr.rel (%p633) target = $region48
      $region47: #{_lambda_.3} parent=43 // pred_region
        _
      $region48: #{_lambda_.3} parent=43 // pred_fallthru
        _
    $region44: #{_lambda_.3} parent=5 // pred_fallthru
      _
    %p636 = scmp.le.s32.totalorder 2, %s12
    // Predicated region
    $region49: #{_lambda_.3} parent=5 // pred_check
      %p637 = pneg %p636
    $region50: #{_lambda_.3} parent=5 // pred_check_branch
      %639 = sbr.rel (%p637) target = $region52
    $region51: #{_lambda_.3} parent=5 // pred_region
      %s640 = ssub.s32 %s12, 2
      // Predicated region
      $region53: #{_lambda_.3} parent=51 // pred_check
        %p641 = pneg %p172
      $region54: #{_lambda_.3} parent=51 // pred_check_branch
        %643 = sbr.rel (%p641) target = $region56
      $region55: #{_lambda_.3} parent=51 // pred_region
        %p644 = scmp.lt.s32.totalorder %s18, 1
        %s645 = scalar_select %p644, %s18, 1
        %s646 = smul.addr %s645, 8
        %s647 = scalar_lea.vmem %s6, %s646
      $region56: #{_lambda_.3} parent=51 // pred_fallthru
        _
    $region52: #{_lambda_.3} parent=5 // pred_fallthru
      _
  $region6: #{_lambda_.3} parent=0 // loop_footer
    %s16 = sadd.s32 1, %s12
  $region7: #{_lambda_.3} parent=0 // loop_footer_branch
    %11 = sbr.rel target = $region3
  $region8: #{_lambda_.3} parent=0 // loop_exit
    _

// kernel: _lambda_.2
$region0: #{_lambda_.2}
  #allocation0 [shape = 'u32[]', space=smem, size = 0x4, offset = 0x4, fixed_abs, tag = 'smem constant byte address 0x4 - core index']
  #allocation1 [shape = 'u32[72,128]{1,0:T(1,128)}', space=vmem, size = 0x9000, scoped, tag = 'internal scratch']
  #allocation2 [shape = 'f32[18,64]{1,0:T(8,128)}', space=vmem, size = 0x3000, scoped, tag = 'scratch operand']
  #allocation3 [shape = 'f32[18,128]{1,0:T(8,128)}', space=vmem, size = 0x3000, scoped, tag = 'scratch operand']
  %s0 = inlined_call_operand.vmem [shape: bf16[2,16,64], index: 0, kind: input, shape index: {}]
  %s1 = inlined_call_operand.vmem [shape: bf16[3,64,128], index: 1, kind: input, shape index: {}]
  %s2 = inlined_call_operand.vmem [shape: f32[1,128], index: 2, kind: input, shape index: {}]
  %s3 = inlined_call_operand.vmem [shape: bf16[3,128,64], index: 3, kind: input, shape index: {}]
  %s4 = inlined_call_operand.vmem [shape: bf16[64,64], index: 4, kind: input, shape index: {}]
  %s5 = inlined_call_operand.vmem [shape: f32[1,64], index: 5, kind: input, shape index: {}]
  %s6 = inlined_call_operand.vmem [shape: bf16[2,8,64], index: 6, kind: output, shape index: {}]
  %s7 = sld [smem:[#allocation0]]
  $region57: #{_lambda_.2} parent=0
    _
  %s9 = ssub.s32 1, %s7
  %s10 = scalar_select 0, %s9, %s7
  loop: start=0, step=1, limit=4
  $region2: #{_lambda_.2} parent=0 // loop_pre_header
    _
  $region3: #{_lambda_.2} parent=0 // loop_header
    %s12 = sphi 0, %s16
    %p13 = scmp.ge.s32.totalorder %s12, 4
    %s22 = sphi 0, %s24
    %s25 = sphi 0, %s22
    %s26 = sphi 0, %s25
    %s42 = sphi 0, %s26
    %s46 = sphi 0, %s46
    %s48 = sphi 0, %s46
    %s49 = sphi 0, %s48
    %s63 = sphi 0, %s49
    %s67 = sphi 0, %s67
    %s69 = sphi 0, %s67
    %s70 = sphi 0, %s69
    %s84 = sphi 0, %s70
    %s88 = sphi 0, %s88
    %s90 = sphi 0, %s88
    %s91 = sphi 0, %s90
    %s105 = sphi 0, %s91
    %s109 = sphi 0, %s109
    %s111 = sphi 0, %s109
    %s112 = sphi 0, %s111
    %s126 = sphi 0, %s112
    %s130 = sphi 0, %s130
    %s132 = sphi 0, %s130
    %s133 = sphi 0, %s132
    %s147 = sphi 0, %s133
    %s153 = sphi 0, %s155
    %s156 = sphi 0, %s153
    %s157 = sphi 0, %s156
    %s173 = sphi 0, %s157
  $region4: #{_lambda_.2} parent=0 // loop_header_branch
    %15 = sbr.rel (%p13) target = $region8
  $region5: #{_lambda_.2} parent=0 // loop_body
    %s17 = ssub.s32 %s12, 1
    %s18 = ssub.s32 %s12, 2
    %s19 = sadd.s32 %s12, 1
    %s20 = ssub.s32 %s12, %s19
    %p21 = scmp.eq.s32.totalorder %s20, 0
    %s23 = sadd.s32 %s22, 1
    %s24 = scalar_select %p21, %s22, %s23
    %p27 = pneg %p21
    %p28 = scmp.eq.s32.totalorder %s12, 1
    %p29 = por %p27, %p28
    %p30 = scmp.ne.s32.totalorder %s22, %s25
    %p31 = scmp.eq.s32.totalorder %s12, 0
    %p32 = por %p30, %p31
    %p33 = scmp.ne.s32.totalorder %s22, %s25
    %p34 = scmp.eq.s32.totalorder %s17, 1
    %p35 = por %p33, %p34
    %p36 = scmp.ne.s32.totalorder %s25, %s26
    %p37 = scmp.eq.s32.totalorder %s17, 0
    %p38 = por %p36, %p37
    %p39 = scmp.ne.s32.totalorder %s25, %s26
    %p40 = scmp.eq.s32.totalorder %s18, 1
    %p41 = por %p39, %p40
    %p43 = scmp.ne.s32.totalorder %s26, %s42
    %p44 = scmp.eq.s32.totalorder %s18, 0
    %p45 = por %p43, %p44
    %s47 = sadd.s32 %s46, 1
    %p50 = scmp.eq.s32.totalorder %s12, 1
    %p51 = scmp.ne.s32.totalorder %s46, %s48
    %p52 = scmp.eq.s32.totalorder %s12, 0
    %p53 = por %p51, %p52
    %p54 = scmp.ne.s32.totalorder %s46, %s48
    %p55 = scmp.eq.s32.totalorder %s17, 1
    %p56 = por %p54, %p55
    %p57 = scmp.ne.s32.totalorder %s48, %s49
    %p58 = scmp.eq.s32.totalorder %s17, 0
    %p59 = por %p57, %p58
    %p60 = scmp.ne.s32.totalorder %s48, %s49
    %p61 = scmp.eq.s32.totalorder %s18, 1
    %p62 = por %p60, %p61
    %p64 = scmp.ne.s32.totalorder %s49, %s63
    %p65 = scmp.eq.s32.totalorder %s18, 0
    %p66 = por %p64, %p65
    %s68 = sadd.s32 %s67, 1
    %p71 = scmp.eq.s32.totalorder %s12, 1
    %p72 = scmp.ne.s32.totalorder %s67, %s69
    %p73 = scmp.eq.s32.totalorder %s12, 0
    %p74 = por %p72, %p73
    %p75 = scmp.ne.s32.totalorder %s67, %s69
    %p76 = scmp.eq.s32.totalorder %s17, 1
    %p77 = por %p75, %p76
    %p78 = scmp.ne.s32.totalorder %s69, %s70
    %p79 = scmp.eq.s32.totalorder %s17, 0
    %p80 = por %p78, %p79
    %p81 = scmp.ne.s32.totalorder %s69, %s70
    %p82 = scmp.eq.s32.totalorder %s18, 1
    %p83 = por %p81, %p82
    %p85 = scmp.ne.s32.totalorder %s70, %s84
    %p86 = scmp.eq.s32.totalorder %s18, 0
    %p87 = por %p85, %p86
    %s89 = sadd.s32 %s88, 1
    %p92 = scmp.eq.s32.totalorder %s12, 1
    %p93 = scmp.ne.s32.totalorder %s88, %s90
    %p94 = scmp.eq.s32.totalorder %s12, 0
    %p95 = por %p93, %p94
    %p96 = scmp.ne.s32.totalorder %s88, %s90
    %p97 = scmp.eq.s32.totalorder %s17, 1
    %p98 = por %p96, %p97
    %p99 = scmp.ne.s32.totalorder %s90, %s91
    %p100 = scmp.eq.s32.totalorder %s17, 0
    %p101 = por %p99, %p100
    %p102 = scmp.ne.s32.totalorder %s90, %s91
    %p103 = scmp.eq.s32.totalorder %s18, 1
    %p104 = por %p102, %p103
    %p106 = scmp.ne.s32.totalorder %s91, %s105
    %p107 = scmp.eq.s32.totalorder %s18, 0
    %p108 = por %p106, %p107
    %s110 = sadd.s32 %s109, 1
    %p113 = scmp.eq.s32.totalorder %s12, 1
    %p114 = scmp.ne.s32.totalorder %s109, %s111
    %p115 = scmp.eq.s32.totalorder %s12, 0
    %p116 = por %p114, %p115
    %p117 = scmp.ne.s32.totalorder %s109, %s111
    %p118 = scmp.eq.s32.totalorder %s17, 1
    %p119 = por %p117, %p118
    %p120 = scmp.ne.s32.totalorder %s111, %s112
    %p121 = scmp.eq.s32.totalorder %s17, 0
    %p122 = por %p120, %p121
    %p123 = scmp.ne.s32.totalorder %s111, %s112
    %p124 = scmp.eq.s32.totalorder %s18, 1
    %p125 = por %p123, %p124
    %p127 = scmp.ne.s32.totalorder %s112, %s126
    %p128 = scmp.eq.s32.totalorder %s18, 0
    %p129 = por %p127, %p128
    %s131 = sadd.s32 %s130, 1
    %p134 = scmp.eq.s32.totalorder %s12, 1
    %p135 = scmp.ne.s32.totalorder %s130, %s132
    %p136 = scmp.eq.s32.totalorder %s12, 0
    %p137 = por %p135, %p136
    %p138 = scmp.ne.s32.totalorder %s130, %s132
    %p139 = scmp.eq.s32.totalorder %s17, 1
    %p140 = por %p138, %p139
    %p141 = scmp.ne.s32.totalorder %s132, %s133
    %p142 = scmp.eq.s32.totalorder %s17, 0
    %p143 = por %p141, %p142
    %p144 = scmp.ne.s32.totalorder %s132, %s133
    %p145 = scmp.eq.s32.totalorder %s18, 1
    %p146 = por %p144, %p145
    %p148 = scmp.ne.s32.totalorder %s133, %s147
    %p149 = scmp.eq.s32.totalorder %s18, 0
    %p150 = por %p148, %p149
    %s151 = ssub.s32 %s12, %s19
    %p152 = scmp.eq.s32.totalorder %s151, 0
    %s154 = sadd.s32 %s153, 1
    %s155 = scalar_select %p152, %s153, %s154
    %p158 = pneg %p152
    %p159 = scmp.eq.s32.totalorder %s12, 1
    %p160 = por %p158, %p159
    %p161 = scmp.ne.s32.totalorder %s153, %s156
    %p162 = scmp.eq.s32.totalorder %s12, 0
    %p163 = por %p161, %p162
    %p164 = scmp.ne.s32.totalorder %s153, %s156
    %p165 = scmp.eq.s32.totalorder %s17, 1
    %p166 = por %p164, %p165
    %p167 = scmp.ne.s32.totalorder %s156, %s157
    %p168 = scmp.eq.s32.totalorder %s17, 0
    %p169 = por %p167, %p168
    %p170 = scmp.ne.s32.totalorder %s156, %s157
    %p171 = scmp.eq.s32.totalorder %s18, 1
    %p172 = por %p170, %p171
    %p174 = scmp.ne.s32.totalorder %s157, %s173
    %p175 = scmp.eq.s32.totalorder %s18, 0
    %p176 = por %p174, %p175
    %p177 = scmp.le.s32.totalorder 1, %s12
    %p178 = scmp.lt.s32.totalorder %s12, 3
    %p179 = pnand %p177, %p178
    %p180 = pneg %p179
    // Predicated region
    $region9: #{_lambda_.2} parent=5 // pred_check
      _
    $region10: #{_lambda_.2} parent=5 // pred_check_branch
      %182 = sbr.rel (%p179) target = $region12
    $region11: #{_lambda_.2} parent=5 // pred_region
      %s183 = ssub.s32 %s12, 1
      // Predicated region
      $region13: #{_lambda_.2} parent=11 // pred_check
        %p184 = pneg %p59
      $region14: #{_lambda_.2} parent=11 // pred_check_branch
        %186 = sbr.rel (%p184) target = $region16
      $region15: #{_lambda_.2} parent=11 // pred_region
        _
      $region16: #{_lambda_.2} parent=11 // pred_fallthru
        _
      // Predicated region
      $region17: #{_lambda_.2} parent=11 // pred_check
        %p187 = pneg %p80
      $region18: #{_lambda_.2} parent=11 // pred_check_branch
        %189 = sbr.rel (%p187) target = $region20
      $region19: #{_lambda_.2} parent=11 // pred_region
        _
      $region20: #{_lambda_.2} parent=11 // pred_fallthru
        _
      // Predicated region
      $region21: #{_lambda_.2} parent=11 // pred_check
        %p190 = pneg %p101
      $region22: #{_lambda_.2} parent=11 // pred_check_branch
        %192 = sbr.rel (%p190) target = $region24
      $region23: #{_lambda_.2} parent=11 // pred_region
        _
      $region24: #{_lambda_.2} parent=11 // pred_fallthru
        _
      // Predicated region
      $region25: #{_lambda_.2} parent=11 // pred_check
        %p193 = pneg %p122
      $region26: #{_lambda_.2} parent=11 // pred_check_branch
        %195 = sbr.rel (%p193) target = $region28
      $region27: #{_lambda_.2} parent=11 // pred_region
        _
      $region28: #{_lambda_.2} parent=11 // pred_fallthru
        _
      // Predicated region
      $region29: #{_lambda_.2} parent=11 // pred_check
        %p196 = pneg %p143
      $region30: #{_lambda_.2} parent=11 // pred_check_branch
        %198 = sbr.rel (%p196) target = $region32
      $region31: #{_lambda_.2} parent=11 // pred_region
        _
      $region32: #{_lambda_.2} parent=11 // pred_fallthru
        _
    $region12: #{_lambda_.2} parent=5 // pred_fallthru
      _
    %p199 = scmp.lt.s32.totalorder %s12, 2
    // Predicated region
    $region33: #{_lambda_.2} parent=5 // pred_check
      %p200 = pneg %p199
    $region34: #{_lambda_.2} parent=5 // pred_check_branch
      %202 = sbr.rel (%p200) target = $region36
    $region35: #{_lambda_.2} parent=5 // pred_region
      // Predicated region
      $region37: #{_lambda_.2} parent=35 // pred_check
        %p203 = pneg %p32
      $region38: #{_lambda_.2} parent=35 // pred_check_branch
        %205 = sbr.rel (%p203) target = $region40
      $region39: #{_lambda_.2} parent=35 // pred_region
        %p206 = scmp.lt.s32.totalorder %s12, 1
        %s207 = scalar_select %p206, %s12, 1
        %s208 = smul.addr %s207, 2
        %s209 = smul.addr %s208, 4
        %s210 = scalar_lea.vmem %s0, %s209
      $region40: #{_lambda_.2} parent=35 // pred_fallthru
        _
    $region36: #{_lambda_.2} parent=5 // pred_fallthru
      _
    %p211 = scmp.le.s32.totalorder 1, %s12
    %p212 = scmp.lt.s32.totalorder %s12, 3
    %p213 = pnand %p211, %p212
    %p214 = pneg %p213
    // Predicated region
    $region41: #{_lambda_.2} parent=5 // pred_check
      _
    $region42: #{_lambda_.2} parent=5 // pred_check_branch
      %216 = sbr.rel (%p213) target = $region44
    $region43: #{_lambda_.2} parent=5 // pred_region
      %s217 = ssub.s32 %s12, 1
      %p218 = scmp.lt.s32.totalorder %s17, 1
      %s219 = scalar_select %p218, %s17, 1
      %s220 = smul.addr %s219, 2
      %s221 = smul.addr %s220, 4
      %s222 = scalar_lea.vmem %s0, %s221
      %p223 = pneg %p38
      %p224 = pneg %p35
      %p225 = pneg %p59
      %p226 = pneg %p56
      %p227 = pneg %p80
      %p228 = pneg %p77
      %p229 = pneg %p101
      %p230 = pneg %p98
      %p231 = pneg %p122
      %p232 = pneg %p119
      %p233 = pneg %p143
      %p234 = pneg %p140
      %p235 = pneg %p169
      %p236 = pneg %p166
      %p237 = scmp.lt.s32.totalorder %s17, 1
      %s238 = scalar_select %p237, %s17, 1
      %s239 = smul.addr %s238, 4
      %s240 = scalar_lea.vmem %s6, %s239
      %p241 = scmp.lt.s32.totalorder %s17, 1
      %s242 = scalar_select %p241, %s17, 1
      %s243 = smul.addr %s242, 2
      %s244 = smul.addr %s243, 4
      %s245 = scalar_lea.vmem %s0, %s244
      %p246 = scmp.lt.s32.totalorder %s17, 1
      %s247 = scalar_select %p246, %s17, 1
      %s248 = smul.addr %s247, 4
      %s249 = scalar_lea.vmem %s6, %s248
      %v251 = vld [vmem:[%s245] sm:$0xf]
      %v252 = vld [vmem:[%s245 + $0x4] sm:$0xf]
      %v253 = vunpack.c.l.bf16 %v251
      %v254 = vunpack.c.l.bf16 %v252
      %vm255 = vcmask 523264
      %256 = vst.msk [vmem:[#allocation2 + $0x1] sm:$0xff] %vm255, %v253
      %257 = vst.msk [vmem:[#allocation2 + $0x9] sm:$0xff] %vm255, %v254
      %vm258 = vcmask 517121
      %259 = vst.msk [vmem:[#allocation2 - $0x1] sm:$0x2] %vm258, %v253
      %vm260 = vcmask 522246
      %261 = vst.msk [vmem:[#allocation2 + $0xb] sm:$0x40] %vm260, %v254
      %v262 = vld [vmem:[#allocation2] sm:$0xff]
      %v263 = vld [vmem:[#allocation2 + $0x8] sm:$0xff]
      %v264 = vpack.c.bf16 %v263, %v262
      %v265 = vld [vmem:[%s1] sm:$0xf]
      %v266 = vld [vmem:[%s1 + $0x4] sm:$0xf]
      %v267 = vld [vmem:[%s1 + $0x8] sm:$0xf]
      %v268 = vld [vmem:[%s1 + $0xc] sm:$0xf]
      %v269 = vld [vmem:[%s1 + $0x10] sm:$0xf]
      %v270 = vld [vmem:[%s1 + $0x14] sm:$0xf]
      %v271 = vld [vmem:[%s1 + $0x18] sm:$0xf]
      %v272 = vld [vmem:[%s1 + $0x1c] sm:$0xf]
      %v273 = vld [vmem:[#allocation2 + $0x1] sm:$0xff]
      %v274 = vld [vmem:[#allocation2 + $0x9] sm:$0xff]
      %v275 = vpack.c.bf16 %v274, %v273
      %s276 = scalar_lea.vmem %s1, 32
      %v277 = vld [vmem:[%s276] sm:$0xf]
      %v278 = vld [vmem:[%s276 + $0x4] sm:$0xf]
      %v279 = vld [vmem:[%s276 + $0x8] sm:$0xf]
      %v280 = vld [vmem:[%s276 + $0xc] sm:$0xf]
      %v281 = vld [vmem:[%s276 + $0x10] sm:$0xf]
      %v282 = vld [vmem:[%s276 + $0x14] sm:$0xf]
      %v283 = vld [vmem:[%s276 + $0x18] sm:$0xf]
      %v284 = vld [vmem:[%s276 + $0x1c] sm:$0xf]
      %v293 = vunpack.c.l.b16 %v277
      %v294 = vunpack.c.l.b16 %v278
      %v295 = vunpack.c.l.b16 %v279
      %v296 = vunpack.c.l.b16 %v280
      %v297 = vunpack.c.l.b16 %v281
      %v298 = vunpack.c.l.b16 %v282
      %v299 = vunpack.c.l.b16 %v283
      %v300 = vunpack.c.l.b16 %v284
      %v301 = vpack.c.b16 %v294, %v293
      %v302 = vpack.c.b16 %v296, %v295
      %v303 = vpack.c.b16 %v298, %v297
      %v304 = vpack.c.b16 %v300, %v299
      %v310 = vsel %vm255, %v275, 0
      %312 = vmatpush.bf16.msra.mxu0 0
      %313 = vmatpush.bf16.msra.mxu0 0
      %314 = vmatpush.bf16.msra.mxu0 0
      %315 = vmatpush.bf16.msra.mxu0 0
      %316 = vmatpush.bf16.msra.mxu0 %v304
      %317 = vmatpush.bf16.msra.mxu0 %v303
      %318 = vmatpush.bf16.msra.mxu0 %v302
      %319 = vmatpush.bf16.msra.mxu0 %v301
      %320 = vmatmul.bf16.gmra.mxu0 %v310
      %v321 = vpop.f32.mrf.mxu0
      %v322 = vadd.f32 0.0, %v321
      %v323 = vpop.f32.mrf.mxu0
      %v324 = vadd.f32 0.0, %v323
      %325 = vdwg.mxu0
      %v334 = vunpack.c.l.b16 %v265
      %v335 = vunpack.c.l.b16 %v266
      %v336 = vunpack.c.l.b16 %v267
      %v337 = vunpack.c.l.b16 %v268
      %v338 = vunpack.c.l.b16 %v269
      %v339 = vunpack.c.l.b16 %v270
      %v340 = vunpack.c.l.b16 %v271
      %v341 = vunpack.c.l.b16 %v272
      %v342 = vpack.c.b16 %v335, %v334
      %v343 = vpack.c.b16 %v337, %v336
      %v344 = vpack.c.b16 %v339, %v338
      %v345 = vpack.c.b16 %v341, %v340
      %v351 = vsel %vm255, %v264, 0
      %353 = vmatpush.bf16.msra.mxu0 0
      %354 = vmatpush.bf16.msra.mxu0 0
      %355 = vmatpush.bf16.msra.mxu0 0
      %356 = vmatpush.bf16.msra.mxu0 0
      %357 = vmatpush.bf16.msra.mxu0 %v345
      %358 = vmatpush.bf16.msra.mxu0 %v344
      %359 = vmatpush.bf16.msra.mxu0 %v343
      %360 = vmatpush.bf16.msra.mxu0 %v342
      %361 = vmatmul.bf16.gmra.mxu0 %v351
      %v362 = vpop.f32.mrf.mxu0
      %v363 = vadd.f32 %v322, %v362
      %v364 = vpop.f32.mrf.mxu0
      %v365 = vadd.f32 %v324, %v364
      %366 = vdwg.mxu0
      %v367 = vld [vmem:[#allocation2 + $0x2] sm:$0xff]
      %v368 = vld [vmem:[#allocation2 + $0xa] sm:$0xff]
      %v369 = vpack.c.bf16 %v368, %v367
      %s370 = scalar_lea.vmem %s1, 64
      %v371 = vld [vmem:[%s370] sm:$0xf]
      %v372 = vld [vmem:[%s370 + $0x4] sm:$0xf]
      %v373 = vld [vmem:[%s370 + $0x8] sm:$0xf]
      %v374 = vld [vmem:[%s370 + $0xc] sm:$0xf]
      %v375 = vld [vmem:[%s370 + $0x10] sm:$0xf]
      %v376 = vld [vmem:[%s370 + $0x14] sm:$0xf]
      %v377 = vld [vmem:[%s370 + $0x18] sm:$0xf]
      %v378 = vld [vmem:[%s370 + $0x1c] sm:$0xf]
      %v387 = vunpack.c.l.b16 %v371
      %v388 = vunpack.c.l.b16 %v372
      %v389 = vunpack.c.l.b16 %v373
      %v390 = vunpack.c.l.b16 %v374
      %v391 = vunpack.c.l.b16 %v375
      %v392 = vunpack.c.l.b16 %v376
      %v393 = vunpack.c.l.b16 %v377
      %v394 = vunpack.c.l.b16 %v378
      %v395 = vpack.c.b16 %v388, %v387
      %v396 = vpack.c.b16 %v390, %v389
      %v397 = vpack.c.b16 %v392, %v391
      %v398 = vpack.c.b16 %v394, %v393
      %v404 = vsel %vm255, %v369, 0
      %406 = vmatpush.bf16.msra.mxu0 0
      %407 = vmatpush.bf16.msra.mxu0 0
      %408 = vmatpush.bf16.msra.mxu0 0
      %409 = vmatpush.bf16.msra.mxu0 0
      %410 = vmatpush.bf16.msra.mxu0 %v398
      %411 = vmatpush.bf16.msra.mxu0 %v397
      %412 = vmatpush.bf16.msra.mxu0 %v396
      %413 = vmatpush.bf16.msra.mxu0 %v395
      %414 = vmatmul.bf16.gmra.mxu0 %v404
      %v415 = vpop.f32.mrf.mxu0
      %v416 = vadd.f32 0.0, %v415
      %v417 = vpop.f32.mrf.mxu0
      %v418 = vadd.f32 0.0, %v417
      %419 = vdwg.mxu0
      %v420 = vadd.f32 %v363, %v416
      %v421 = vadd.f32 %v365, %v418
      %v422 = vld [vmem:[%s2] sm:$0x1]
      %v424 = vperm.slane %v422, 0
      %v426 = vadd.f32 %v420, %v424
      %v427 = vadd.f32 %v421, %v424
      %v428 = vmax.f32 %v426, 0.0
      %v429 = vmax.f32 %v427, 0.0
      %430 = vst [vmem:[#allocation3 + $0x1] sm:$0xff] %v428
      %431 = vst [vmem:[#allocation3 + $0x9] sm:$0xff] %v429
      %432 = vst [vmem:[#allocation3 - $0x1] sm:$0x2] %v428
      %433 = vst [vmem:[#allocation3 + $0xb] sm:$0x40] %v429
      %v434 = vld [vmem:[#allocation3] ss:$2 sm:$0xff]
      %v435 = vpack.c.bf16 %v434, %v434
      %v436 = vld [vmem:[%s3] sm:$0xf]
      %v437 = vld [vmem:[%s3 + $0x4] sm:$0xf]
      %v438 = vld [vmem:[%s3 + $0x8] sm:$0xf]
      %v439 = vld [vmem:[%s3 + $0xc] sm:$0xf]
      %v440 = vld [vmem:[%s3 + $0x10] sm:$0xf]
      %v441 = vld [vmem:[%s3 + $0x14] sm:$0xf]
      %v442 = vld [vmem:[%s3 + $0x18] sm:$0xf]
      %v443 = vld [vmem:[%s3 + $0x1c] sm:$0xf]
      %v444 = vld [vmem:[%s3 + $0x20] sm:$0xf]
      %v445 = vld [vmem:[%s3 + $0x24] sm:$0xf]
      %v446 = vld [vmem:[%s3 + $0x28] sm:$0xf]
      %v447 = vld [vmem:[%s3 + $0x2c] sm:$0xf]
      %v448 = vld [vmem:[%s3 + $0x30] sm:$0xf]
      %v449 = vld [vmem:[%s3 + $0x34] sm:$0xf]
      %v450 = vld [vmem:[%s3 + $0x38] sm:$0xf]
      %v451 = vld [vmem:[%s3 + $0x3c] sm:$0xf]
      %s452 = scalar_lea.vmem [#allocation3], 1
      %v453 = vld [vmem:[%s452] ss:$2 sm:$0xff]
      %v454 = vpack.c.bf16 %v453, %v453
      %s455 = scalar_lea.vmem %s3, 64
      %v456 = vld [vmem:[%s455] sm:$0xf]
      %v457 = vld [vmem:[%s455 + $0x4] sm:$0xf]
      %v458 = vld [vmem:[%s455 + $0x8] sm:$0xf]
      %v459 = vld [vmem:[%s455 + $0xc] sm:$0xf]
      %v460 = vld [vmem:[%s455 + $0x10] sm:$0xf]
      %v461 = vld [vmem:[%s455 + $0x14] sm:$0xf]
      %v462 = vld [vmem:[%s455 + $0x18] sm:$0xf]
      %v463 = vld [vmem:[%s455 + $0x1c] sm:$0xf]
      %v464 = vld [vmem:[%s455 + $0x20] sm:$0xf]
      %v465 = vld [vmem:[%s455 + $0x24] sm:$0xf]
      %v466 = vld [vmem:[%s455 + $0x28] sm:$0xf]
      %v467 = vld [vmem:[%s455 + $0x2c] sm:$0xf]
      %v468 = vld [vmem:[%s455 + $0x30] sm:$0xf]
      %v469 = vld [vmem:[%s455 + $0x34] sm:$0xf]
      %v470 = vld [vmem:[%s455 + $0x38] sm:$0xf]
      %v471 = vld [vmem:[%s455 + $0x3c] sm:$0xf]
      %v488 = vunpack.c.l.b16 %v456
      %v489 = vunpack.c.l.b16 %v457
      %v490 = vunpack.c.l.b16 %v458
      %v491 = vunpack.c.l.b16 %v459
      %v492 = vunpack.c.l.b16 %v460
      %v493 = vunpack.c.l.b16 %v461
      %v494 = vunpack.c.l.b16 %v462
      %v495 = vunpack.c.l.b16 %v463
      %v496 = vunpack.c.l.b16 %v464
      %v497 = vunpack.c.l.b16 %v465
      %v498 = vunpack.c.l.b16 %v466
      %v499 = vunpack.c.l.b16 %v467
      %v500 = vunpack.c.l.b16 %v468
      %v501 = vunpack.c.l.b16 %v469
      %v502 = vunpack.c.l.b16 %v470
      %v503 = vunpack.c.l.b16 %v471
      %v504 = vpack.c.b16 %v489, %v488
      %v505 = vpack.c.b16 %v491, %v490
      %v506 = vpack.c.b16 %v493, %v492
      %v507 = vpack.c.b16 %v495, %v494
      %v508 = vpack.c.b16 %v497, %v496
      %v509 = vpack.c.b16 %v499, %v498
      %v510 = vpack.c.b16 %v501, %v500
      %v511 = vpack.c.b16 %v503, %v502
      %520 = vmatpush.bf16.msra.mxu0 %v511
      %521 = vmatpush.bf16.msra.mxu0 %v510
      %522 = vmatpush.bf16.msra.mxu0 %v509
      %523 = vmatpush.bf16.msra.mxu0 %v508
      %524 = vmatpush.bf16.msra.mxu0 %v507
      %525 = vmatpush.bf16.msra.mxu0 %v506
      %526 = vmatpush.bf16.msra.mxu0 %v505
      %527 = vmatpush.bf16.msra.mxu0 %v504
      %528 = vmatmul.bf16.gmra.mxu0 %v454
      %v529 = vpop.f32.mrf.mxu0
      %v530 = vadd.f32 0.0, %v529
      %v531 = vpop.f32.mrf.mxu0
      %532 = vdwg.mxu0
      %v549 = vunpack.c.l.b16 %v436
      %v550 = vunpack.c.l.b16 %v437
      %v551 = vunpack.c.l.b16 %v438
      %v552 = vunpack.c.l.b16 %v439
      %v553 = vunpack.c.l.b16 %v440
      %v554 = vunpack.c.l.b16 %v441
      %v555 = vunpack.c.l.b16 %v442
      %v556 = vunpack.c.l.b16 %v443
      %v557 = vunpack.c.l.b16 %v444
      %v558 = vunpack.c.l.b16 %v445
      %v559 = vunpack.c.l.b16 %v446
      %v560 = vunpack.c.l.b16 %v447
      %v561 = vunpack.c.l.b16 %v448
      %v562 = vunpack.c.l.b16 %v449
      %v563 = vunpack.c.l.b16 %v450
      %v564 = vunpack.c.l.b16 %v451
      %v565 = vpack.c.b16 %v550, %v549
      %v566 = vpack.c.b16 %v552, %v551
      %v567 = vpack.c.b16 %v554, %v553
      %v568 = vpack.c.b16 %v556, %v555
      %v569 = vpack.c.b16 %v558, %v557
      %v570 = vpack.c.b16 %v560, %v559
      %v571 = vpack.c.b16 %v562, %v561
      %v572 = vpack.c.b16 %v564, %v563
      %581 = vmatpush.bf16.msra.mxu0 %v572
      %582 = vmatpush.bf16.msra.mxu0 %v571
      %583 = vmatpush.bf16.msra.mxu0 %v570
      %584 = vmatpush.bf16.msra.mxu0 %v569
      %585 = vmatpush.bf16.msra.mxu0 %v568
      %586 = vmatpush.bf16.msra.mxu0 %v567
      %587 = vmatpush.bf16.msra.mxu0 %v566
      %588 = vmatpush.bf16.msra.mxu0 %v565
      %589 = vmatmul.bf16.gmra.mxu0 %v435
      %v590 = vpop.f32.mrf.mxu0
      %v591 = vadd.f32 %v530, %v590
      %v592 = vpop.f32.mrf.mxu0
      %593 = vdwg.mxu0
      %s594 = scalar_lea.vmem [#allocation3], 2
      %v595 = vld [vmem:[%s594] ss:$2 sm:$0xff]
      %v596 = vpack.c.bf16 %v595, %v595
      %s597 = scalar_lea.vmem %s3, 128
      %v598 = vld [vmem:[%s597] sm:$0xf]
      %v599 = vld [vmem:[%s597 + $0x4] sm:$0xf]
      %v600 = vld [vmem:[%s597 + $0x8] sm:$0xf]
      %v601 = vld [vmem:[%s597 + $0xc] sm:$0xf]
      %v602 = vld [vmem:[%s597 + $0x10] sm:$0xf]
      %v603 = vld [vmem:[%s597 + $0x14] sm:$0xf]
      %v604 = vld [vmem:[%s597 + $0x18] sm:$0xf]
      %v605 = vld [vmem:[%s597 + $0x1c] sm:$0xf]
      %v606 = vld [vmem:[%s597 + $0x20] sm:$0xf]
      %v607 = vld [vmem:[%s597 + $0x24] sm:$0xf]
      %v608 = vld [vmem:[%s597 + $0x28] sm:$0xf]
      %v609 = vld [vmem:[%s597 + $0x2c] sm:$0xf]
      %v610 = vld [vmem:[%s597 + $0x30] sm:$0xf]
      %v611 = vld [vmem:[%s597 + $0x34] sm:$0xf]
      %v612 = vld [vmem:[%s597 + $0x38] sm:$0xf]
      %v613 = vld [vmem:[%s597 + $0x3c] sm:$0xf]
      %v630 = vunpack.c.l.b16 %v598
      %v631 = vunpack.c.l.b16 %v599
      %v632 = vunpack.c.l.b16 %v600
      %v633 = vunpack.c.l.b16 %v601
      %v634 = vunpack.c.l.b16 %v602
      %v635 = vunpack.c.l.b16 %v603
      %v636 = vunpack.c.l.b16 %v604
      %v637 = vunpack.c.l.b16 %v605
      %v638 = vunpack.c.l.b16 %v606
      %v639 = vunpack.c.l.b16 %v607
      %v640 = vunpack.c.l.b16 %v608
      %v641 = vunpack.c.l.b16 %v609
      %v642 = vunpack.c.l.b16 %v610
      %v643 = vunpack.c.l.b16 %v611
      %v644 = vunpack.c.l.b16 %v612
      %v645 = vunpack.c.l.b16 %v613
      %v646 = vpack.c.b16 %v631, %v630
      %v647 = vpack.c.b16 %v633, %v632
      %v648 = vpack.c.b16 %v635, %v634
      %v649 = vpack.c.b16 %v637, %v636
      %v650 = vpack.c.b16 %v639, %v638
      %v651 = vpack.c.b16 %v641, %v640
      %v652 = vpack.c.b16 %v643, %v642
      %v653 = vpack.c.b16 %v645, %v644
      %662 = vmatpush.bf16.msra.mxu0 %v653
      %663 = vmatpush.bf16.msra.mxu0 %v652
      %664 = vmatpush.bf16.msra.mxu0 %v651
      %665 = vmatpush.bf16.msra.mxu0 %v650
      %666 = vmatpush.bf16.msra.mxu0 %v649
      %667 = vmatpush.bf16.msra.mxu0 %v648
      %668 = vmatpush.bf16.msra.mxu0 %v647
      %669 = vmatpush.bf16.msra.mxu0 %v646
      %670 = vmatmul.bf16.gmra.mxu0 %v596
      %v671 = vpop.f32.mrf.mxu0
      %v672 = vadd.f32 0.0, %v671
      %v673 = vpop.f32.mrf.mxu0
      %674 = vdwg.mxu0
      %v675 = vadd.f32 %v591, %v672
      %s676 = scalar_lea.vmem [#allocation2], 1
      %v677 = vld [vmem:[%s676] ss:$2 sm:$0xff]
      %v678 = vpack.c.bf16 %v677, %v677
      %v679 = vld [vmem:[%s4] sm:$0xf]
      %v680 = vld [vmem:[%s4 + $0x4] sm:$0xf]
      %v681 = vld [vmem:[%s4 + $0x8] sm:$0xf]
      %v682 = vld [vmem:[%s4 + $0xc] sm:$0xf]
      %v683 = vld [vmem:[%s4 + $0x10] sm:$0xf]
      %v684 = vld [vmem:[%s4 + $0x14] sm:$0xf]
      %v685 = vld [vmem:[%s4 + $0x18] sm:$0xf]
      %v686 = vld [vmem:[%s4 + $0x1c] sm:$0xf]
      %v695 = vunpack.c.l.b16 %v679
      %v696 = vunpack.c.l.b16 %v680
      %v697 = vunpack.c.l.b16 %v681
      %v698 = vunpack.c.l.b16 %v682
      %v699 = vunpack.c.l.b16 %v683
      %v700 = vunpack.c.l.b16 %v684
      %v701 = vunpack.c.l.b16 %v685
      %v702 = vunpack.c.l.b16 %v686
      %v703 = vpack.c.b16 %v696, %v695
      %v704 = vpack.c.b16 %v698, %v697
      %v705 = vpack.c.b16 %v700, %v699
      %v706 = vpack.c.b16 %v702, %v701
      %v712 = vsel %vm255, %v678, 0
      %714 = vmatpush.bf16.msra.mxu0 0
      %715 = vmatpush.bf16.msra.mxu0 0
      %716 = vmatpush.bf16.msra.mxu0 0
      %717 = vmatpush.bf16.msra.mxu0 0
      %718 = vmatpush.bf16.msra.mxu0 %v706
      %719 = vmatpush.bf16.msra.mxu0 %v705
      %720 = vmatpush.bf16.msra.mxu0 %v704
      %721 = vmatpush.bf16.msra.mxu0 %v703
      %722 = vmatmul.bf16.gmra.mxu0 %v712
      %v723 = vpop.f32.mrf.mxu0
      %v724 = vadd.f32 0.0, %v723
      %v725 = vpop.f32.mrf.mxu0
      %726 = vdwg.mxu0
      %v727 = vadd.f32 %v675, %v724
      %v728 = vld [vmem:[%s5] sm:$0x1]
      %v730 = vperm.slane %v728, 0
      %v732 = vadd.f32 %v727, %v730
      %v733 = vmax.f32 %v732, 0.0
      %v734 = vpack.c.bf16 %v733, %v733
      %vm735 = vcmask 519168
      %736 = vst.msk [vmem:[%s249] sm:$0xf] %vm735, %v734
      %p737 = scmp.lt.s32.totalorder %s17, 1
      %s738 = scalar_select %p737, %s17, 1
      %s739 = smul.addr %s738, 4
      %s740 = scalar_lea.vmem %s6, %s739
      // Predicated region
      $region45: #{_lambda_.2} parent=43 // pred_check
        %p741 = pneg %p166
      $region46: #{_lambda_.2} parent=43 // pred_check_branch
        %743 = sbr.rel (%p741) target = $region48
      $region47: #{_lambda_.2} parent=43 // pred_region
        _
      $region48: #{_lambda_.2} parent=43 // pred_fallthru
        _
    $region44: #{_lambda_.2} parent=5 // pred_fallthru
      _
    %p744 = scmp.le.s32.totalorder 2, %s12
    // Predicated region
    $region49: #{_lambda_.2} parent=5 // pred_check
      %p745 = pneg %p744
    $region50: #{_lambda_.2} parent=5 // pred_check_branch
      %747 = sbr.rel (%p745) target = $region52
    $region51: #{_lambda_.2} parent=5 // pred_region
      %s748 = ssub.s32 %s12, 2
      // Predicated region
      $region53: #{_lambda_.2} parent=51 // pred_check
        %p749 = pneg %p172
      $region54: #{_lambda_.2} parent=51 // pred_check_branch
        %751 = sbr.rel (%p749) target = $region56
      $region55: #{_lambda_.2} parent=51 // pred_region
        %p752 = scmp.lt.s32.totalorder %s18, 1
        %s753 = scalar_select %p752, %s18, 1
        %s754 = smul.addr %s753, 4
        %s755 = scalar_lea.vmem %s6, %s754
      $region56: #{_lambda_.2} parent=51 // pred_fallthru
        _
    $region52: #{_lambda_.2} parent=5 // pred_fallthru
      _
  $region6: #{_lambda_.2} parent=0 // loop_footer
    %s16 = sadd.s32 1, %s12
  $region7: #{_lambda_.2} parent=0 // loop_footer_branch
    %11 = sbr.rel target = $region3
  $region8: #{_lambda_.2} parent=0 // loop_exit
    _

</llo_original>
